<compile_context>
chip_gen: v7x
topology: tpu7x:2x2x1
jax: 0.10.0
libtpu: 0.0.40
codegen_flags: <defaults>
</compile_context>

<pallas_src>
import math
import functools

import jax
import jax.numpy as jnp
from jax.experimental import pallas as pl
from jax.experimental.pallas import tpu as pltpu


# ----------------------------- fused encoder-layer kernel -----------------------------

def _encoder_kernel(x_ref, mask_ref, wqkv_ref, bqkv_ref, wo_ref, bo_ref,
                    w1_ref, b1_ref, w2_ref, b2_ref, o_ref, *,
                    num_heads, d_head, scale, eps):
    # x_ref:    [M, D]      (M = B*S, D = num_heads*d_head)
    # mask_ref: [M, M]      block-diagonal per-batch mask (1.0 attend / 0.0 masked)
    # wqkv_ref: [D, 3D], bqkv_ref: [1, 3D]
    # wo_ref:   [D, D],  bo_ref:   [1, D]
    # w1_ref:   [D, F],  b1_ref:   [1, F]
    # w2_ref:   [F, D],  b2_ref:   [1, D]
    x = x_ref[...]
    D = num_heads * d_head

    # ---- fused Q/K/V projection: one MXU pass over [M, D] x [D, 3D] ----
    qkv = jnp.dot(x, wqkv_ref[...], preferred_element_type=jnp.float32) + bqkv_ref[...]

    mask = mask_ref[...]
    neg_inf = jnp.float32(-1e9)

    # ---- per-head attention, batched over the batch dim via the block-diag mask ----
    head_outs = []
    for h in range(num_heads):                      # static unroll (small H)
        lo = h * d_head
        hi = lo + d_head
        q_h = qkv[:, lo:hi]                          # [M, Dh]
        k_h = qkv[:, D + lo:D + hi]                  # [M, Dh]
        v_h = qkv[:, 2 * D + lo:2 * D + hi]          # [M, Dh]

        # scores = q @ k^T without an explicit transpose (contract last dims).
        s = jax.lax.dot_general(
            q_h, k_h, (((1,), (1,)), ((), ())),
            preferred_element_type=jnp.float32) * scale        # [M, M]
        s = jnp.where(mask == 0.0, neg_inf, s)
        s = s - jnp.max(s, axis=-1, keepdims=True)
        p = jnp.exp(s)
        p = p / jnp.sum(p, axis=-1, keepdims=True)   # exact division (tolerance-safe)
        head_outs.append(jnp.dot(p, v_h, preferred_element_type=jnp.float32))

    attn = jnp.concatenate(head_outs, axis=-1)       # [M, D]  (merge heads in VMEM)
    attn = jnp.dot(attn, wo_ref[...], preferred_element_type=jnp.float32) + bo_ref[...]

    # ---- add & global layer norm 1 (normalized over the entire tensor) ----
    y = x + attn
    mu = jnp.mean(y)
    var = jnp.mean(jnp.square(y - mu))
    x1 = (y - mu) * jax.lax.rsqrt(var + eps)

    # ---- feed forward: relu(x1 @ W1 + b1) @ W2 + b2 ----
    hdn = jnp.dot(x1, w1_ref[...], preferred_element_type=jnp.float32) + b1_ref[...]
    hdn = jnp.maximum(hdn, 0.0)
    f = jnp.dot(hdn, w2_ref[...], preferred_element_type=jnp.float32) + b2_ref[...]

    # ---- add & global layer norm 2 ----
    y2 = x1 + f
    mu2 = jnp.mean(y2)
    var2 = jnp.mean(jnp.square(y2 - mu2))
    o_ref[...] = (y2 - mu2) * jax.lax.rsqrt(var2 + eps)


# ----------------------------- encoder layer wrapper -----------------------------

def init_params(key, d_model, num_heads, d_ffn):
    ks = jax.random.split(key, 12)
    s = 0.02
    n = jax.random.normal
    return dict(
        num_heads=num_heads,
        wq=s * n(ks[0], (d_model, d_model), jnp.float32),
        bq=s * n(ks[1], (d_model,), jnp.float32),
        wk=s * n(ks[2], (d_model, d_model), jnp.float32),
        bk=s * n(ks[3], (d_model,), jnp.float32),
        wv=s * n(ks[4], (d_model, d_model), jnp.float32),
        bv=s * n(ks[5], (d_model,), jnp.float32),
        wo=s * n(ks[6], (d_model, d_model), jnp.float32),
        bo=s * n(ks[7], (d_model,), jnp.float32),
        w1=s * n(ks[8], (d_model, d_ffn), jnp.float32),
        b1=s * n(ks[9], (d_ffn,), jnp.float32),
        w2=s * n(ks[10], (d_ffn, d_model), jnp.float32),
        b2=s * n(ks[11], (d_model,), jnp.float32),
    )


def encoder_layer(x, mask, p):
    """Multi-Head Attention => Add & Norm => Feed Forward => Add & Norm (one fused kernel)."""
    B, S, D = x.shape
    H = p['num_heads']
    Dh = D // H
    M = B * S
    F_ = p['w1'].shape[1]
    x2d = x.reshape(M, D)

    # Fused QKV weights / biases: [D, 3D] and [1, 3D].
    wqkv = jnp.concatenate([p['wq'], p['wk'], p['wv']], axis=1)
    bqkv = jnp.concatenate([p['bq'], p['bk'], p['bv']]).reshape(1, 3 * D)

    # Fold the [B,1,S,S] mask into a block-diagonal [M, M] mask so attention over
    # all batches runs as one in-kernel computation (cross-batch entries masked).
    blk = jnp.eye(B, dtype=jnp.float32)                       # [B, B]
    full_mask = (blk[:, None, :, None] * mask[:, 0][:, :, None, :]).reshape(M, M)

    kern = functools.partial(_encoder_kernel, num_heads=H, d_head=Dh,
                             scale=1.0 / math.sqrt(Dh), eps=1e-5)

    out2d = pl.pallas_call(
        kern,
        out_shape=jax.ShapeDtypeStruct((M, D), jnp.float32),
        # No grid: single invocation, every operand lives fully in VMEM
        # (total working set here is tiny), output written once as a [M, D] slab.
    )(x2d, full_mask,
      wqkv, bqkv,
      p['wo'], p['bo'].reshape(1, D),
      p['w1'], p['b1'].reshape(1, F_),
      p['w2'], p['b2'].reshape(1, D))

    return out2d.reshape(B, S, D)


# ----------------------------- pure-JAX reference -----------------------------

def encoder_ref(x, mask, p):
    B, S, D = x.shape
    H = p['num_heads']
    Dh = D // H
    x2d = x.reshape(B * S, D)

    def lin(t, w, b):
        return t @ w + b

    def split(t):
        return t.reshape(B, S, H, Dh).transpose(0, 2, 1, 3)

    q, k, v = (split(lin(x2d, p['w' + c], p['b' + c])) for c in 'qkv')
    s = jnp.einsum('bhqd,bhkd->bhqk', q, k) / math.sqrt(Dh)
    s = jnp.where(mask == 0.0, -1e9, s)
    s = s - jnp.max(s, axis=-1, keepdims=True)
    pr = jnp.exp(s)
    pr = pr / jnp.sum(pr, axis=-1, keepdims=True)
    a = jnp.einsum('bhqk,bhkd->bhqd', pr, v)
    a = lin(a.transpose(0, 2, 1, 3).reshape(B * S, D), p['wo'], p['bo'])

    def gnorm(y, eps=1e-5):
        m = jnp.mean(y)
        return (y - m) / jnp.sqrt(jnp.mean((y - m) ** 2) + eps)

    x1 = gnorm(x2d + a)
    f = jnp.maximum(x1 @ p['w1'] + p['b1'], 0.0) @ p['w2'] + p['b2']
    x2 = gnorm(x1 + f)
    return x2.reshape(B, S, D)


# ----------------------------- main -----------------------------

if __name__ == "__main__":
    d_model, num_heads, d_ffn = 32, 4, 64     # small, forward-consistent sizes
    B, S = 2, 8

    key = jax.random.PRNGKey(0)
    kx, km, kp = jax.random.split(key, 3)
    x = jax.random.normal(kx, (B, S, d_model), jnp.float32)
    mask = (jax.random.uniform(km, (B, 1, S, S)) > 0.2).astype(jnp.float32)
    mask = jnp.maximum(mask, jnp.eye(S, dtype=jnp.float32)[None, None])  # self always visible
    params = init_params(kp, d_model, num_heads, d_ffn)

    out = encoder_layer(x, mask, params)
    out = jax.block_until_ready(out)

    ref = encoder_ref(x, mask, params)
    assert out.shape == (B, S, d_model)
    assert bool(jnp.all(jnp.isfinite(out)))
    assert bool(jnp.allclose(out, ref, atol=1e-4, rtol=1e-4)), "mismatch vs JAX reference"
    print("KERNEL_OK")
</pallas_src>

<mosaic_0001>
module attributes {stable_mosaic.version = 11 : i64} {
  func.func @_encoder_kernel(%arg0: memref<16x32xf32, #tpu.memory_space<vmem>>, %arg1: memref<16x16xf32, #tpu.memory_space<vmem>>, %arg2: memref<32x96xf32, #tpu.memory_space<vmem>>, %arg3: memref<1x96xf32, #tpu.memory_space<vmem>>, %arg4: memref<32x32xf32, #tpu.memory_space<vmem>>, %arg5: memref<1x32xf32, #tpu.memory_space<vmem>>, %arg6: memref<32x64xf32, #tpu.memory_space<vmem>>, %arg7: memref<1x64xf32, #tpu.memory_space<vmem>>, %arg8: memref<64x32xf32, #tpu.memory_space<vmem>>, %arg9: memref<1x32xf32, #tpu.memory_space<vmem>>, %arg10: memref<16x32xf32, #tpu.memory_space<vmem>>) attributes {dimension_semantics = [], scalar_prefetch = 0 : i64, scratch_operands = 0 : i64, tpu.core_type = #tpu.core_type<tc>} {
    %c0 = arith.constant 0 : index
    %c0_0 = arith.constant 0 : index
    %0 = vector.load %arg0[%c0, %c0_0] : memref<16x32xf32, #tpu.memory_space<vmem>>, vector<16x32xf32>
    %c0_1 = arith.constant 0 : index
    %c0_2 = arith.constant 0 : index
    %1 = vector.load %arg2[%c0_1, %c0_2] : memref<32x96xf32, #tpu.memory_space<vmem>>, vector<32x96xf32>
    %cst = arith.constant dense<0.000000e+00> : vector<16x96xf32>
    %2 = tpu.matmul %0, %1, %cst {dimension_numbers = #tpu.dot_dimension_numbers<[1], [0], [0], [1], [0, 0, 1, 1], [], []>} : vector<16x32xf32>, vector<32x96xf32>, vector<16x96xf32> -> vector<16x96xf32>
    %c0_3 = arith.constant 0 : index
    %c0_4 = arith.constant 0 : index
    %3 = vector.load %arg3[%c0_3, %c0_4] : memref<1x96xf32, #tpu.memory_space<vmem>>, vector<1x96xf32>
    %4 = vector.broadcast %3 : vector<1x96xf32> to vector<16x96xf32>
    %5 = arith.addf %2, %4 : vector<16x96xf32>
    %c0_5 = arith.constant 0 : index
    %c0_6 = arith.constant 0 : index
    %6 = vector.load %arg1[%c0_5, %c0_6] : memref<16x16xf32, #tpu.memory_space<vmem>>, vector<16x16xf32>
    %7 = vector.extract_strided_slice %5 {offsets = [0, 0], sizes = [16, 8], strides = [1, 1]} : vector<16x96xf32> to vector<16x8xf32>
    %8 = vector.extract_strided_slice %5 {offsets = [0, 32], sizes = [16, 8], strides = [1, 1]} : vector<16x96xf32> to vector<16x8xf32>
    %9 = vector.extract_strided_slice %5 {offsets = [0, 64], sizes = [16, 8], strides = [1, 1]} : vector<16x96xf32> to vector<16x8xf32>
    %cst_7 = arith.constant dense<0.000000e+00> : vector<16x16xf32>
    %10 = tpu.matmul %7, %8, %cst_7 {dimension_numbers = #tpu.dot_dimension_numbers<[1], [1], [0], [0], [0, 0, 1, 0], [], []>} : vector<16x8xf32>, vector<16x8xf32>, vector<16x16xf32> -> vector<16x16xf32>
    %cst_8 = arith.constant 0.353553385 : f32
    %11 = vector.broadcast %cst_8 : f32 to vector<16x16xf32>
    %12 = arith.mulf %10, %11 : vector<16x16xf32>
    %cst_9 = arith.constant 0.000000e+00 : f32
    %13 = vector.broadcast %cst_9 : f32 to vector<16x16xf32>
    %14 = arith.cmpf oeq, %6, %13 : vector<16x16xf32>
    %cst_10 = arith.constant -1.000000e+09 : f32
    %15 = vector.broadcast %cst_10 : f32 to vector<16x16xf32>
    %16 = arith.select %14, %15, %12 : vector<16x16xi1>, vector<16x16xf32>
    %cst_11 = arith.constant dense<0xFF800000> : vector<16xf32>
    %17 = vector.multi_reduction <maximumf>, %16, %cst_11 [1] : vector<16x16xf32> to vector<16xf32>
    %18 = vector.shape_cast %17 : vector<16xf32> to vector<16x1xf32>
    %19 = vector.broadcast %18 : vector<16x1xf32> to vector<16x16xf32>
    %20 = arith.subf %16, %19 : vector<16x16xf32>
    %21 = math.exp %20 : vector<16x16xf32>
    %cst_12 = arith.constant dense<0.000000e+00> : vector<16xf32>
    %22 = vector.multi_reduction <add>, %21, %cst_12 [1] : vector<16x16xf32> to vector<16xf32>
    %23 = vector.shape_cast %22 : vector<16xf32> to vector<16x1xf32>
    %24 = vector.broadcast %23 : vector<16x1xf32> to vector<16x16xf32>
    %25 = arith.divf %21, %24 : vector<16x16xf32>
    %cst_13 = arith.constant dense<0.000000e+00> : vector<16x8xf32>
    %26 = tpu.matmul %25, %9, %cst_13 {dimension_numbers = #tpu.dot_dimension_numbers<[1], [0], [0], [1], [0, 0, 1, 1], [], []>} : vector<16x16xf32>, vector<16x8xf32>, vector<16x8xf32> -> vector<16x8xf32>
    %27 = vector.extract_strided_slice %5 {offsets = [0, 8], sizes = [16, 8], strides = [1, 1]} : vector<16x96xf32> to vector<16x8xf32>
    %28 = vector.extract_strided_slice %5 {offsets = [0, 40], sizes = [16, 8], strides = [1, 1]} : vector<16x96xf32> to vector<16x8xf32>
    %29 = vector.extract_strided_slice %5 {offsets = [0, 72], sizes = [16, 8], strides = [1, 1]} : vector<16x96xf32> to vector<16x8xf32>
    %cst_14 = arith.constant dense<0.000000e+00> : vector<16x16xf32>
    %30 = tpu.matmul %27, %28, %cst_14 {dimension_numbers = #tpu.dot_dimension_numbers<[1], [1], [0], [0], [0, 0, 1, 0], [], []>} : vector<16x8xf32>, vector<16x8xf32>, vector<16x16xf32> -> vector<16x16xf32>
    %cst_15 = arith.constant 0.353553385 : f32
    %31 = vector.broadcast %cst_15 : f32 to vector<16x16xf32>
    %32 = arith.mulf %30, %31 : vector<16x16xf32>
    %cst_16 = arith.constant 0.000000e+00 : f32
    %33 = vector.broadcast %cst_16 : f32 to vector<16x16xf32>
    %34 = arith.cmpf oeq, %6, %33 : vector<16x16xf32>
    %cst_17 = arith.constant -1.000000e+09 : f32
    %35 = vector.broadcast %cst_17 : f32 to vector<16x16xf32>
    %36 = arith.select %34, %35, %32 : vector<16x16xi1>, vector<16x16xf32>
    %cst_18 = arith.constant dense<0xFF800000> : vector<16xf32>
    %37 = vector.multi_reduction <maximumf>, %36, %cst_18 [1] : vector<16x16xf32> to vector<16xf32>
    %38 = vector.shape_cast %37 : vector<16xf32> to vector<16x1xf32>
    %39 = vector.broadcast %38 : vector<16x1xf32> to vector<16x16xf32>
    %40 = arith.subf %36, %39 : vector<16x16xf32>
    %41 = math.exp %40 : vector<16x16xf32>
    %cst_19 = arith.constant dense<0.000000e+00> : vector<16xf32>
    %42 = vector.multi_reduction <add>, %41, %cst_19 [1] : vector<16x16xf32> to vector<16xf32>
    %43 = vector.shape_cast %42 : vector<16xf32> to vector<16x1xf32>
    %44 = vector.broadcast %43 : vector<16x1xf32> to vector<16x16xf32>
    %45 = arith.divf %41, %44 : vector<16x16xf32>
    %cst_20 = arith.constant dense<0.000000e+00> : vector<16x8xf32>
    %46 = tpu.matmul %45, %29, %cst_20 {dimension_numbers = #tpu.dot_dimension_numbers<[1], [0], [0], [1], [0, 0, 1, 1], [], []>} : vector<16x16xf32>, vector<16x8xf32>, vector<16x8xf32> -> vector<16x8xf32>
    %47 = vector.extract_strided_slice %5 {offsets = [0, 16], sizes = [16, 8], strides = [1, 1]} : vector<16x96xf32> to vector<16x8xf32>
    %48 = vector.extract_strided_slice %5 {offsets = [0, 48], sizes = [16, 8], strides = [1, 1]} : vector<16x96xf32> to vector<16x8xf32>
    %49 = vector.extract_strided_slice %5 {offsets = [0, 80], sizes = [16, 8], strides = [1, 1]} : vector<16x96xf32> to vector<16x8xf32>
    %cst_21 = arith.constant dense<0.000000e+00> : vector<16x16xf32>
    %50 = tpu.matmul %47, %48, %cst_21 {dimension_numbers = #tpu.dot_dimension_numbers<[1], [1], [0], [0], [0, 0, 1, 0], [], []>} : vector<16x8xf32>, vector<16x8xf32>, vector<16x16xf32> -> vector<16x16xf32>
    %cst_22 = arith.constant 0.353553385 : f32
    %51 = vector.broadcast %cst_22 : f32 to vector<16x16xf32>
    %52 = arith.mulf %50, %51 : vector<16x16xf32>
    %cst_23 = arith.constant 0.000000e+00 : f32
    %53 = vector.broadcast %cst_23 : f32 to vector<16x16xf32>
    %54 = arith.cmpf oeq, %6, %53 : vector<16x16xf32>
    %cst_24 = arith.constant -1.000000e+09 : f32
    %55 = vector.broadcast %cst_24 : f32 to vector<16x16xf32>
    %56 = arith.select %54, %55, %52 : vector<16x16xi1>, vector<16x16xf32>
    %cst_25 = arith.constant dense<0xFF800000> : vector<16xf32>
    %57 = vector.multi_reduction <maximumf>, %56, %cst_25 [1] : vector<16x16xf32> to vector<16xf32>
    %58 = vector.shape_cast %57 : vector<16xf32> to vector<16x1xf32>
    %59 = vector.broadcast %58 : vector<16x1xf32> to vector<16x16xf32>
    %60 = arith.subf %56, %59 : vector<16x16xf32>
    %61 = math.exp %60 : vector<16x16xf32>
    %cst_26 = arith.constant dense<0.000000e+00> : vector<16xf32>
    %62 = vector.multi_reduction <add>, %61, %cst_26 [1] : vector<16x16xf32> to vector<16xf32>
    %63 = vector.shape_cast %62 : vector<16xf32> to vector<16x1xf32>
    %64 = vector.broadcast %63 : vector<16x1xf32> to vector<16x16xf32>
    %65 = arith.divf %61, %64 : vector<16x16xf32>
    %cst_27 = arith.constant dense<0.000000e+00> : vector<16x8xf32>
    %66 = tpu.matmul %65, %49, %cst_27 {dimension_numbers = #tpu.dot_dimension_numbers<[1], [0], [0], [1], [0, 0, 1, 1], [], []>} : vector<16x16xf32>, vector<16x8xf32>, vector<16x8xf32> -> vector<16x8xf32>
    %67 = vector.extract_strided_slice %5 {offsets = [0, 24], sizes = [16, 8], strides = [1, 1]} : vector<16x96xf32> to vector<16x8xf32>
    %68 = vector.extract_strided_slice %5 {offsets = [0, 56], sizes = [16, 8], strides = [1, 1]} : vector<16x96xf32> to vector<16x8xf32>
    %69 = vector.extract_strided_slice %5 {offsets = [0, 88], sizes = [16, 8], strides = [1, 1]} : vector<16x96xf32> to vector<16x8xf32>
    %cst_28 = arith.constant dense<0.000000e+00> : vector<16x16xf32>
    %70 = tpu.matmul %67, %68, %cst_28 {dimension_numbers = #tpu.dot_dimension_numbers<[1], [1], [0], [0], [0, 0, 1, 0], [], []>} : vector<16x8xf32>, vector<16x8xf32>, vector<16x16xf32> -> vector<16x16xf32>
    %cst_29 = arith.constant 0.353553385 : f32
    %71 = vector.broadcast %cst_29 : f32 to vector<16x16xf32>
    %72 = arith.mulf %70, %71 : vector<16x16xf32>
    %cst_30 = arith.constant 0.000000e+00 : f32
    %73 = vector.broadcast %cst_30 : f32 to vector<16x16xf32>
    %74 = arith.cmpf oeq, %6, %73 : vector<16x16xf32>
    %cst_31 = arith.constant -1.000000e+09 : f32
    %75 = vector.broadcast %cst_31 : f32 to vector<16x16xf32>
    %76 = arith.select %74, %75, %72 : vector<16x16xi1>, vector<16x16xf32>
    %cst_32 = arith.constant dense<0xFF800000> : vector<16xf32>
    %77 = vector.multi_reduction <maximumf>, %76, %cst_32 [1] : vector<16x16xf32> to vector<16xf32>
    %78 = vector.shape_cast %77 : vector<16xf32> to vector<16x1xf32>
    %79 = vector.broadcast %78 : vector<16x1xf32> to vector<16x16xf32>
    %80 = arith.subf %76, %79 : vector<16x16xf32>
    %81 = math.exp %80 : vector<16x16xf32>
    %cst_33 = arith.constant dense<0.000000e+00> : vector<16xf32>
    %82 = vector.multi_reduction <add>, %81, %cst_33 [1] : vector<16x16xf32> to vector<16xf32>
    %83 = vector.shape_cast %82 : vector<16xf32> to vector<16x1xf32>
    %84 = vector.broadcast %83 : vector<16x1xf32> to vector<16x16xf32>
    %85 = arith.divf %81, %84 : vector<16x16xf32>
    %cst_34 = arith.constant dense<0.000000e+00> : vector<16x8xf32>
    %86 = tpu.matmul %85, %69, %cst_34 {dimension_numbers = #tpu.dot_dimension_numbers<[1], [0], [0], [1], [0, 0, 1, 1], [], []>} : vector<16x16xf32>, vector<16x8xf32>, vector<16x8xf32> -> vector<16x8xf32>
    %87 = tpu.concatenate %26, %46, %66, %86 in 1 : vector<16x8xf32>, vector<16x8xf32>, vector<16x8xf32>, vector<16x8xf32> -> vector<16x32xf32>
    %c0_35 = arith.constant 0 : index
    %c0_36 = arith.constant 0 : index
    %88 = vector.load %arg4[%c0_35, %c0_36] : memref<32x32xf32, #tpu.memory_space<vmem>>, vector<32x32xf32>
    %cst_37 = arith.constant dense<0.000000e+00> : vector<16x32xf32>
    %89 = tpu.matmul %87, %88, %cst_37 {dimension_numbers = #tpu.dot_dimension_numbers<[1], [0], [0], [1], [0, 0, 1, 1], [], []>} : vector<16x32xf32>, vector<32x32xf32>, vector<16x32xf32> -> vector<16x32xf32>
    %c0_38 = arith.constant 0 : index
    %c0_39 = arith.constant 0 : index
    %90 = vector.load %arg5[%c0_38, %c0_39] : memref<1x32xf32, #tpu.memory_space<vmem>>, vector<1x32xf32>
    %91 = vector.broadcast %90 : vector<1x32xf32> to vector<16x32xf32>
    %92 = arith.addf %89, %91 : vector<16x32xf32>
    %93 = arith.addf %0, %92 : vector<16x32xf32>
    %94 = vector.shape_cast %93 : vector<16x32xf32> to vector<1x16x32xf32>
    %cst_40 = arith.constant dense<0.000000e+00> : vector<1xf32>
    %95 = vector.multi_reduction <add>, %94, %cst_40 [1, 2] : vector<1x16x32xf32> to vector<1xf32>
    %96 = vector.shape_cast %95 : vector<1xf32> to vector<1x1x1xf32>
    %97 = vector.extract %96[0, 0, 0] : f32 from vector<1x1x1xf32>
    %cst_41 = arith.constant 5.120000e+02 : f32
    %98 = arith.divf %97, %cst_41 : f32
    %99 = vector.broadcast %98 : f32 to vector<16x32xf32>
    %100 = arith.subf %93, %99 : vector<16x32xf32>
    %101 = arith.mulf %100, %100 : vector<16x32xf32>
    %102 = vector.shape_cast %101 : vector<16x32xf32> to vector<1x16x32xf32>
    %cst_42 = arith.constant dense<0.000000e+00> : vector<1xf32>
    %103 = vector.multi_reduction <add>, %102, %cst_42 [1, 2] : vector<1x16x32xf32> to vector<1xf32>
    %104 = vector.shape_cast %103 : vector<1xf32> to vector<1x1x1xf32>
    %105 = vector.extract %104[0, 0, 0] : f32 from vector<1x1x1xf32>
    %cst_43 = arith.constant 5.120000e+02 : f32
    %106 = arith.divf %105, %cst_43 : f32
    %107 = vector.broadcast %98 : f32 to vector<16x32xf32>
    %108 = arith.subf %93, %107 : vector<16x32xf32>
    %cst_44 = arith.constant 9.99999974E-6 : f32
    %109 = arith.addf %106, %cst_44 : f32
    %110 = math.rsqrt %109 : f32
    %111 = vector.broadcast %110 : f32 to vector<16x32xf32>
    %112 = arith.mulf %108, %111 : vector<16x32xf32>
    %c0_45 = arith.constant 0 : index
    %c0_46 = arith.constant 0 : index
    %113 = vector.load %arg6[%c0_45, %c0_46] : memref<32x64xf32, #tpu.memory_space<vmem>>, vector<32x64xf32>
    %cst_47 = arith.constant dense<0.000000e+00> : vector<16x64xf32>
    %114 = tpu.matmul %112, %113, %cst_47 {dimension_numbers = #tpu.dot_dimension_numbers<[1], [0], [0], [1], [0, 0, 1, 1], [], []>} : vector<16x32xf32>, vector<32x64xf32>, vector<16x64xf32> -> vector<16x64xf32>
    %c0_48 = arith.constant 0 : index
    %c0_49 = arith.constant 0 : index
    %115 = vector.load %arg7[%c0_48, %c0_49] : memref<1x64xf32, #tpu.memory_space<vmem>>, vector<1x64xf32>
    %116 = vector.broadcast %115 : vector<1x64xf32> to vector<16x64xf32>
    %117 = arith.addf %114, %116 : vector<16x64xf32>
    %cst_50 = arith.constant 0.000000e+00 : f32
    %118 = vector.broadcast %cst_50 : f32 to vector<16x64xf32>
    %119 = arith.maximumf %117, %118 : vector<16x64xf32>
    %c0_51 = arith.constant 0 : index
    %c0_52 = arith.constant 0 : index
    %120 = vector.load %arg8[%c0_51, %c0_52] : memref<64x32xf32, #tpu.memory_space<vmem>>, vector<64x32xf32>
    %cst_53 = arith.constant dense<0.000000e+00> : vector<16x32xf32>
    %121 = tpu.matmul %119, %120, %cst_53 {dimension_numbers = #tpu.dot_dimension_numbers<[1], [0], [0], [1], [0, 0, 1, 1], [], []>} : vector<16x64xf32>, vector<64x32xf32>, vector<16x32xf32> -> vector<16x32xf32>
    %c0_54 = arith.constant 0 : index
    %c0_55 = arith.constant 0 : index
    %122 = vector.load %arg9[%c0_54, %c0_55] : memref<1x32xf32, #tpu.memory_space<vmem>>, vector<1x32xf32>
    %123 = vector.broadcast %122 : vector<1x32xf32> to vector<16x32xf32>
    %124 = arith.addf %121, %123 : vector<16x32xf32>
    %125 = arith.addf %112, %124 : vector<16x32xf32>
    %126 = vector.shape_cast %125 : vector<16x32xf32> to vector<1x16x32xf32>
    %cst_56 = arith.constant dense<0.000000e+00> : vector<1xf32>
    %127 = vector.multi_reduction <add>, %126, %cst_56 [1, 2] : vector<1x16x32xf32> to vector<1xf32>
    %128 = vector.shape_cast %127 : vector<1xf32> to vector<1x1x1xf32>
    %129 = vector.extract %128[0, 0, 0] : f32 from vector<1x1x1xf32>
    %cst_57 = arith.constant 5.120000e+02 : f32
    %130 = arith.divf %129, %cst_57 : f32
    %131 = vector.broadcast %130 : f32 to vector<16x32xf32>
    %132 = arith.subf %125, %131 : vector<16x32xf32>
    %133 = arith.mulf %132, %132 : vector<16x32xf32>
    %134 = vector.shape_cast %133 : vector<16x32xf32> to vector<1x16x32xf32>
    %cst_58 = arith.constant dense<0.000000e+00> : vector<1xf32>
    %135 = vector.multi_reduction <add>, %134, %cst_58 [1, 2] : vector<1x16x32xf32> to vector<1xf32>
    %136 = vector.shape_cast %135 : vector<1xf32> to vector<1x1x1xf32>
    %137 = vector.extract %136[0, 0, 0] : f32 from vector<1x1x1xf32>
    %cst_59 = arith.constant 5.120000e+02 : f32
    %138 = arith.divf %137, %cst_59 : f32
    %139 = vector.broadcast %130 : f32 to vector<16x32xf32>
    %140 = arith.subf %125, %139 : vector<16x32xf32>
    %cst_60 = arith.constant 9.99999974E-6 : f32
    %141 = arith.addf %138, %cst_60 : f32
    %142 = math.rsqrt %141 : f32
    %143 = vector.broadcast %142 : f32 to vector<16x32xf32>
    %144 = arith.mulf %140, %143 : vector<16x32xf32>
    %c0_61 = arith.constant 0 : index
    %c0_62 = arith.constant 0 : index
    %145 = vector.load %arg10[%c0_61, %c0_62] : memref<16x32xf32, #tpu.memory_space<vmem>>, vector<16x32xf32>
    tpu.vector_store %arg10[%c0_61, %c0_62], %144 {strides = array<i32>} : memref<16x32xf32, #tpu.memory_space<vmem>>, vector<16x32xf32>,
    return
  }
}

</mosaic_0001>

<llo_original>
// kernel: tpu_custom_call.1
$region0: #{tpu_custom_call.1}
  #allocation0 [shape = 'u32[]', space=smem, size = 0x4, offset = 0x4, fixed_abs, tag = 'smem constant byte address 0x4 - core index']
  #allocation1 [shape = 'u32[144,128]{1,0:T(1,128)}', space=vmem, size = 0x12000, scoped, tag = 'internal scratch']
  %s0 = inlined_call_operand.hbm [shape: f32[16,32], index: 0, kind: input, shape index: {}]
  %s1 = inlined_call_operand.hbm [shape: f32[16,16], index: 1, kind: input, shape index: {}]
  %s2 = inlined_call_operand.vmem [shape: f32[32,96], index: 2, kind: input, shape index: {}]
  %s3 = inlined_call_operand.vmem [shape: f32[1,96], index: 3, kind: input, shape index: {}]
  %s4 = inlined_call_operand.vmem [shape: f32[32,32], index: 4, kind: input, shape index: {}]
  %s5 = inlined_call_operand.vmem [shape: f32[1,32], index: 5, kind: input, shape index: {}]
  %s6 = inlined_call_operand.vmem [shape: f32[32,64], index: 6, kind: input, shape index: {}]
  %s7 = inlined_call_operand.vmem [shape: f32[1,64], index: 7, kind: input, shape index: {}]
  %s8 = inlined_call_operand.vmem [shape: f32[64,32], index: 8, kind: input, shape index: {}]
  %s9 = inlined_call_operand.vmem [shape: f32[1,32], index: 9, kind: input, shape index: {}]
  %s10 = inlined_call_operand.hbm [shape: f32[16,32], index: 10, kind: output, shape index: {}]
  %s11 = sld [smem:[#allocation0]]
  $region58: #{tpu_custom_call.1} parent=0
    _
  %s13 = ssub.s32 1, %s11
  %s14 = scalar_select 0, %s13, %s11
  $region1: #{tpu_custom_call.1} parent=0
    #allocation2 [shape = 'u8[8192]{0}', space=vmem, size = 0x2000, scoped, tag = 'input window, operand 0, single buffered']
    #allocation3 [shape = 's32[1]{0}', space=sflag, size = 0x4, scoped, tag = 'scoped memory for tpu_custom_call.1']
    #allocation4 [shape = 's32[1]{0}', space=sflag, size = 0x4, scoped, tag = 'scoped memory for tpu_custom_call.1']
    #allocation5 [shape = 'u8[8192]{0}', space=vmem, size = 0x2000, scoped, tag = 'input window, operand 1, single buffered']
    #allocation6 [shape = 's32[1]{0}', space=sflag, size = 0x4, scoped, tag = 'scoped memory for tpu_custom_call.1']
    #allocation7 [shape = 'u8[8192]{0}', space=vmem, size = 0x2000, scoped, tag = 'output window, operand 0, single buffered']
    %15 = vsyncpa [#allocation3], 0
    %16 = vsyncpa [#allocation6], 0
    %17 = vsyncpa [#allocation4], 0
    // Predicated region
    $region2: #{tpu_custom_call.1} parent=1 // pred_check
      _
    $region3: #{tpu_custom_call.1} parent=1 // pred_check_branch
      %19 = sbr.rel (0) target = $region5
    $region4: #{tpu_custom_call.1} parent=1 // pred_region
      %s21 = ssub.s32 256, 256
      %22 = vsyncadd [#allocation3], %s21
      %s23 = sshll.u32 [#allocation2], 4
      %s24 = int_to_ptr.vmem [resolvable:$true] %s23
      %29 = dma.hbm_to_vmem [thread:$0]  %s0, 256, %s24, [#allocation3], 128, 128, 8
    $region5: #{tpu_custom_call.1} parent=1 // pred_fallthru
      _
    // Predicated region
    $region6: #{tpu_custom_call.1} parent=1 // pred_check
      _
    $region7: #{tpu_custom_call.1} parent=1 // pred_check_branch
      %31 = sbr.rel (0) target = $region9
    $region8: #{tpu_custom_call.1} parent=1 // pred_region
      %s33 = ssub.s32 256, 256
      %34 = vsyncadd [#allocation6], %s33
      %s35 = sshll.u32 [#allocation5], 4
      %s36 = int_to_ptr.vmem [resolvable:$true] %s35
      %41 = dma.hbm_to_vmem [thread:$0]  %s1, 256, %s36, [#allocation6], 128, 128, 8
    $region9: #{tpu_custom_call.1} parent=1 // pred_fallthru
      _
    // Predicated region
    $region10: #{tpu_custom_call.1} parent=1 // pred_check
      _
    $region11: #{tpu_custom_call.1} parent=1 // pred_check_branch
      %43 = sbr.rel (0) target = $region13
    $region12: #{tpu_custom_call.1} parent=1 // pred_region
      _
    $region13: #{tpu_custom_call.1} parent=1 // pred_fallthru
      _
    // Predicated region
    $region14: #{tpu_custom_call.1} parent=1 // pred_check
      _
    $region15: #{tpu_custom_call.1} parent=1 // pred_check_branch
      %45 = sbr.rel (0) target = $region17
    $region16: #{tpu_custom_call.1} parent=1 // pred_region
      _
    $region17: #{tpu_custom_call.1} parent=1 // pred_fallthru
      _
    // Predicated region
    $region18: #{tpu_custom_call.1} parent=1 // pred_check
      _
    $region19: #{tpu_custom_call.1} parent=1 // pred_check_branch
      %47 = sbr.rel (0) target = $region21
    $region20: #{tpu_custom_call.1} parent=1 // pred_region
      _
    $region21: #{tpu_custom_call.1} parent=1 // pred_fallthru
      _
    // Predicated region
    $region22: #{tpu_custom_call.1} parent=1 // pred_check
      _
    $region23: #{tpu_custom_call.1} parent=1 // pred_check_branch
      %49 = sbr.rel (0) target = $region25
    $region24: #{tpu_custom_call.1} parent=1 // pred_region
      _
    $region25: #{tpu_custom_call.1} parent=1 // pred_fallthru
      _
    // Predicated region
    $region26: #{tpu_custom_call.1} parent=1 // pred_check
      _
    $region27: #{tpu_custom_call.1} parent=1 // pred_check_branch
      %51 = sbr.rel (0) target = $region29
    $region28: #{tpu_custom_call.1} parent=1 // pred_region
      _
    $region29: #{tpu_custom_call.1} parent=1 // pred_fallthru
      _
    // Predicated region
    $region30: #{tpu_custom_call.1} parent=1 // pred_check
      _
    $region31: #{tpu_custom_call.1} parent=1 // pred_check_branch
      %53 = sbr.rel (0) target = $region33
    $region32: #{tpu_custom_call.1} parent=1 // pred_region
      _
    $region33: #{tpu_custom_call.1} parent=1 // pred_fallthru
      _
    // Predicated region
    $region34: #{tpu_custom_call.1} parent=1 // pred_check
      _
    $region35: #{tpu_custom_call.1} parent=1 // pred_check_branch
      %55 = sbr.rel (0) target = $region37
    $region36: #{tpu_custom_call.1} parent=1 // pred_region
      _
    $region37: #{tpu_custom_call.1} parent=1 // pred_fallthru
      _
    // Predicated region
    $region38: #{tpu_custom_call.1} parent=1 // pred_check
      _
    $region39: #{tpu_custom_call.1} parent=1 // pred_check_branch
      %57 = sbr.rel (0) target = $region41
    $region40: #{tpu_custom_call.1} parent=1 // pred_region
      _
    $region41: #{tpu_custom_call.1} parent=1 // pred_fallthru
      _
    // Predicated region
    $region42: #{tpu_custom_call.1} parent=1 // pred_check
      _
    $region43: #{tpu_custom_call.1} parent=1 // pred_check_branch
      %59 = sbr.rel (0) target = $region45
    $region44: #{tpu_custom_call.1} parent=1 // pred_region
      %60 = dma.done [#allocation3], 256
    $region45: #{tpu_custom_call.1} parent=1 // pred_fallthru
      _
    // Predicated region
    $region46: #{tpu_custom_call.1} parent=1 // pred_check
      _
    $region47: #{tpu_custom_call.1} parent=1 // pred_check_branch
      %62 = sbr.rel (0) target = $region49
    $region48: #{tpu_custom_call.1} parent=1 // pred_region
      %63 = dma.done [#allocation6], 256
    $region49: #{tpu_custom_call.1} parent=1 // pred_fallthru
      _
    %v64 = vld [vmem:[#allocation2] sm:$0xff]
    %v65 = vld [vmem:[#allocation2 + $0x8] sm:$0xff]
    %v66 = vld [vmem:[%s2] sm:$0xff]
    %v67 = vld [vmem:[%s2 + $0x8] sm:$0xff]
    %v68 = vld [vmem:[%s2 + $0x10] sm:$0xff]
    %v69 = vld [vmem:[%s2 + $0x18] sm:$0xff]
    %v70 = vld [vmem:[%s3] sm:$0x1]
    %v72 = vlaneseq
    %v73 = vshrl.u32 %v72, 7
    %v74 = vsub.s32 0, %v73
    %v75 = vrot.slane %v70, %v74
    %vm77 = vcmask 261120
    %v79 = vsel %vm77, %v64, 0
    %v82 = vsel %vm77, %v65, 0
    %84 = vmatprep.subr.mxu0 0.0
    %85 = vmatpush1.msra.mxu0 %v66
    %86 = vmatprep.subr.mxu0 0.0
    %87 = vmatpush1.msra.mxu0 %v67
    %88 = vmatprep.subr.mxu0 0.0
    %89 = vmatpush1.msra.mxu0 %v68
    %90 = vmatprep.subr.mxu0 0.0
    %91 = vmatpush1.msra.mxu0 %v69
    %92 = vmatprep.subr.mxu0 0.0
    %93 = vmatpush1.msra.mxu0 0.0
    %94 = vmatprep.subr.mxu0 0.0
    %95 = vmatpush1.msra.mxu0 0.0
    %96 = vmatprep.subr.mxu0 0.0
    %97 = vmatpush1.msra.mxu0 0.0
    %98 = vmatprep.subr.mxu0 0.0
    %99 = vmatpush1.msra.mxu0 0.0
    %100 = vmatprep.subr.mxu0 0.0
    %101 = vmatpush1.msra.mxu0 0.0
    %102 = vmatprep.subr.mxu0 0.0
    %103 = vmatpush1.msra.mxu0 0.0
    %104 = vmatprep.subr.mxu0 0.0
    %105 = vmatpush1.msra.mxu0 0.0
    %106 = vmatprep.subr.mxu0 0.0
    %107 = vmatpush1.msra.mxu0 0.0
    %108 = vmatprep.subr.mxu0 0.0
    %109 = vmatpush1.msra.mxu0 0.0
    %110 = vmatprep.subr.mxu0 0.0
    %111 = vmatpush1.msra.mxu0 0.0
    %112 = vmatprep.subr.mxu0 0.0
    %113 = vmatpush1.msra.mxu0 0.0
    %114 = vmatprep.subr.mxu0 0.0
    %115 = vmatpush1.msra.mxu0 0.0
    %116 = vmatprep.subr.mxu0 0.0
    %117 = vmatpush1.msra.mxu0 0.0
    %118 = vmatprep.subr.mxu0 0.0
    %119 = vmatpush1.msra.mxu0 0.0
    %120 = vmatprep.subr.mxu0 0.0
    %121 = vmatpush1.msra.mxu0 0.0
    %122 = vmatprep.subr.mxu0 0.0
    %123 = vmatpush1.msra.mxu0 0.0
    %124 = vmatprep.subr.mxu0 0.0
    %125 = vmatpush1.msra.mxu0 0.0
    %126 = vmatprep.subr.mxu0 0.0
    %127 = vmatpush1.msra.mxu0 0.0
    %128 = vmatprep.subr.mxu0 0.0
    %129 = vmatpush1.msra.mxu0 0.0
    %130 = vmatprep.subr.mxu0 0.0
    %131 = vmatpush1.msra.mxu0 0.0
    %132 = vmatprep.subr.mxu0 0.0
    %133 = vmatpush1.msra.mxu0 0.0
    %134 = vmatprep.subr.mxu0 0.0
    %135 = vmatpush1.msra.mxu0 0.0
    %136 = vmatprep.subr.mxu0 0.0
    %137 = vmatpush1.msra.mxu0 0.0
    %138 = vmatprep.subr.mxu0 0.0
    %139 = vmatpush1.msra.mxu0 0.0
    %140 = vmatprep.subr.mxu0 0.0
    %141 = vmatpush1.msra.mxu0 0.0
    %142 = vmatprep.subr.mxu0 0.0
    %143 = vmatpush1.msra.mxu0 0.0
    %144 = vmatprep.subr.mxu0 0.0
    %145 = vmatpush1.msra.mxu0 0.0
    %146 = vmatprep.subr.mxu0 0.0
    %147 = vmatpush1.msra.mxu0 0.0
    %148 = vmatprep.mubr.f32.mxu0 0.0
    %149 = vmatmul.mubr.f32.gmra.mrb[0].mxu0 %v79
    %v150 = vpop.f32.mrb[0].mxu0
    %v151 = vadd.f32 %v75, %v150
    %v152 = vpop.f32.mrb[0].mxu0
    %153 = vmatprep.mubr.f32.mxu0 0.0
    %154 = vmatmul.mubr.f32.gmra.mrb[0].mxu0 %v82
    %v155 = vpop.f32.mrb[0].mxu0
    %v156 = vadd.f32 %v75, %v155
    %v157 = vpop.f32.mrb[0].mxu0
    %158 = vdwg.mxu0
    %v159 = vld [vmem:[#allocation5] sm:$0xff]
    %v160 = vld [vmem:[#allocation5 + $0x8] sm:$0xff]
    %163 = vrot.lane.b32.xlu0 %v151, 96
    %v164 = vpop.permute.xlu0 %163
    %165 = vrot.lane.b32.xlu0 %v156, 96
    %v166 = vpop.permute.xlu0 %165
    %vm167 = vcmask 64512
    %v168 = vsel %vm167, %v151, 0
    %v170 = vsel %vm167, %v156, 0
    %v172 = vsel %vm167, %v164, 0
    %v174 = vsel %vm167, %v166, 0
    %176 = vmatprep.subr.mxu0 0.0
    %177 = vmatpush1.xpose.msra.mxu0 %v172
    %178 = vmatprep.subr.mxu0 0.0
    %179 = vmatpush1.xpose.msra.mxu0 %v174
    %180 = vmatprep.subr.mxu0 0.0
    %181 = vmatpush1.xpose.msra.mxu0 0.0
    %182 = vmatprep.subr.mxu0 0.0
    %183 = vmatpush1.xpose.msra.mxu0 0.0
    %184 = vmatprep.subr.mxu0 0.0
    %185 = vmatpush1.xpose.msra.mxu0 0.0
    %186 = vmatprep.subr.mxu0 0.0
    %187 = vmatpush1.xpose.msra.mxu0 0.0
    %188 = vmatprep.subr.mxu0 0.0
    %189 = vmatpush1.xpose.msra.mxu0 0.0
    %190 = vmatprep.subr.mxu0 0.0
    %191 = vmatpush1.xpose.msra.mxu0 0.0
    %192 = vmatprep.subr.mxu0 0.0
    %193 = vmatpush1.xpose.msra.mxu0 0.0
    %194 = vmatprep.subr.mxu0 0.0
    %195 = vmatpush1.xpose.msra.mxu0 0.0
    %196 = vmatprep.subr.mxu0 0.0
    %197 = vmatpush1.xpose.msra.mxu0 0.0
    %198 = vmatprep.subr.mxu0 0.0
    %199 = vmatpush1.xpose.msra.mxu0 0.0
    %200 = vmatprep.subr.mxu0 0.0
    %201 = vmatpush1.xpose.msra.mxu0 0.0
    %202 = vmatprep.subr.mxu0 0.0
    %203 = vmatpush1.xpose.msra.mxu0 0.0
    %204 = vmatprep.subr.mxu0 0.0
    %205 = vmatpush1.xpose.msra.mxu0 0.0
    %206 = vmatprep.subr.mxu0 0.0
    %207 = vmatpush1.xpose.msra.mxu0 0.0
    %208 = vmatprep.subr.mxu0 0.0
    %209 = vmatpush1.xpose.msra.mxu0 0.0
    %210 = vmatprep.subr.mxu0 0.0
    %211 = vmatpush1.xpose.msra.mxu0 0.0
    %212 = vmatprep.subr.mxu0 0.0
    %213 = vmatpush1.xpose.msra.mxu0 0.0
    %214 = vmatprep.subr.mxu0 0.0
    %215 = vmatpush1.xpose.msra.mxu0 0.0
    %216 = vmatprep.subr.mxu0 0.0
    %217 = vmatpush1.xpose.msra.mxu0 0.0
    %218 = vmatprep.subr.mxu0 0.0
    %219 = vmatpush1.xpose.msra.mxu0 0.0
    %220 = vmatprep.subr.mxu0 0.0
    %221 = vmatpush1.xpose.msra.mxu0 0.0
    %222 = vmatprep.subr.mxu0 0.0
    %223 = vmatpush1.xpose.msra.mxu0 0.0
    %224 = vmatprep.subr.mxu0 0.0
    %225 = vmatpush1.xpose.msra.mxu0 0.0
    %226 = vmatprep.subr.mxu0 0.0
    %227 = vmatpush1.xpose.msra.mxu0 0.0
    %228 = vmatprep.subr.mxu0 0.0
    %229 = vmatpush1.xpose.msra.mxu0 0.0
    %230 = vmatprep.subr.mxu0 0.0
    %231 = vmatpush1.xpose.msra.mxu0 0.0
    %232 = vmatprep.subr.mxu0 0.0
    %233 = vmatpush1.xpose.msra.mxu0 0.0
    %234 = vmatprep.subr.mxu0 0.0
    %235 = vmatpush1.xpose.msra.mxu0 0.0
    %236 = vmatprep.subr.mxu0 0.0
    %237 = vmatpush1.xpose.msra.mxu0 0.0
    %238 = vmatprep.subr.mxu0 0.0
    %239 = vmatpush1.xpose.msra.mxu0 0.0
    %240 = vmatprep.mubr.f32.mxu0 0.0
    %241 = vmatmul.mubr.f32.gmra.mrb[0].mxu0 %v168
    %v242 = vpop.f32.mrb[0].mxu0
    %v243 = vadd.f32 0.0, %v242
    %v244 = vpop.f32.mrb[0].mxu0
    %245 = vmatprep.mubr.f32.mxu0 0.0
    %246 = vmatmul.mubr.f32.gmra.mrb[0].mxu0 %v170
    %v247 = vpop.f32.mrb[0].mxu0
    %v248 = vadd.f32 0.0, %v247
    %v249 = vpop.f32.mrb[0].mxu0
    %250 = vdwg.mxu0
    %v251 = vmul.f32 %v243, 0.35355338
    %v252 = vmul.f32 %v248, 0.35355338
    %vm253 = vcmp.eq.f32.partialorder %v159, 0.0
    %vm254 = vcmp.eq.f32.partialorder %v160, 0.0
    %v255 = vsel %vm253, -1e+09, %v251
    %v256 = vsel %vm254, -1e+09, %v252
    %vm257 = vcmask 130048
    %v258 = vsel %vm257, %v255, -inf
    %259 = vmax.xlane.f32.xlu0 %v258
    %v260 = vpop.xlane.xlu0 %259
    %v261 = vsel %vm257, %v256, -inf
    %262 = vmax.xlane.f32.xlu0 %v261
    %v263 = vpop.xlane.xlu0 %262
    %v264 = vsub.f32 %v255, %v260
    %v265 = vsub.f32 %v256, %v263
    %v266 = vmul.f32 %v264, 1.442695
    %v267 = vpow.pop %v266
    %v268 = vmul.f32 %v265, 1.442695
    %v269 = vpow.pop %v268
    %v270 = vsel %vm257, %v267, 0.0
    %271 = vadd.xlane.f32.xlu0 %v270
    %v272 = vpop.xlane.xlu0 %271
    %v273 = vsel %vm257, %v269, 0.0
    %274 = vadd.xlane.f32.xlu0 %v273
    %v275 = vpop.xlane.xlu0 %274
    %v276 = vrcp.pop %v272
    %v277 = vmul.f32 %v267, %v276
    %v278 = vrcp.pop %v275
    %v279 = vmul.f32 %v269, %v278
    %280 = vrot.lane.b32.xlu0 %v151, 64
    %v281 = vpop.permute.xlu0 %280
    %282 = vrot.lane.b32.xlu0 %v156, 64
    %v283 = vpop.permute.xlu0 %282
    %v287 = vsel %vm257, %v277, 0
    %v290 = vsel %vm257, %v279, 0
    %292 = vmatprep.subr.mxu0 0.0
    %293 = vmatpush1.msra.mxu0 %v281
    %294 = vmatprep.subr.mxu0 0.0
    %295 = vmatpush1.msra.mxu0 %v283
    %296 = vmatprep.subr.mxu0 0.0
    %297 = vmatpush1.msra.mxu0 0.0
    %298 = vmatprep.subr.mxu0 0.0
    %299 = vmatpush1.msra.mxu0 0.0
    %300 = vmatprep.subr.mxu0 0.0
    %301 = vmatpush1.msra.mxu0 0.0
    %302 = vmatprep.subr.mxu0 0.0
    %303 = vmatpush1.msra.mxu0 0.0
    %304 = vmatprep.subr.mxu0 0.0
    %305 = vmatpush1.msra.mxu0 0.0
    %306 = vmatprep.subr.mxu0 0.0
    %307 = vmatpush1.msra.mxu0 0.0
    %308 = vmatprep.subr.mxu0 0.0
    %309 = vmatpush1.msra.mxu0 0.0
    %310 = vmatprep.subr.mxu0 0.0
    %311 = vmatpush1.msra.mxu0 0.0
    %312 = vmatprep.subr.mxu0 0.0
    %313 = vmatpush1.msra.mxu0 0.0
    %314 = vmatprep.subr.mxu0 0.0
    %315 = vmatpush1.msra.mxu0 0.0
    %316 = vmatprep.subr.mxu0 0.0
    %317 = vmatpush1.msra.mxu0 0.0
    %318 = vmatprep.subr.mxu0 0.0
    %319 = vmatpush1.msra.mxu0 0.0
    %320 = vmatprep.subr.mxu0 0.0
    %321 = vmatpush1.msra.mxu0 0.0
    %322 = vmatprep.subr.mxu0 0.0
    %323 = vmatpush1.msra.mxu0 0.0
    %324 = vmatprep.subr.mxu0 0.0
    %325 = vmatpush1.msra.mxu0 0.0
    %326 = vmatprep.subr.mxu0 0.0
    %327 = vmatpush1.msra.mxu0 0.0
    %328 = vmatprep.subr.mxu0 0.0
    %329 = vmatpush1.msra.mxu0 0.0
    %330 = vmatprep.subr.mxu0 0.0
    %331 = vmatpush1.msra.mxu0 0.0
    %332 = vmatprep.subr.mxu0 0.0
    %333 = vmatpush1.msra.mxu0 0.0
    %334 = vmatprep.subr.mxu0 0.0
    %335 = vmatpush1.msra.mxu0 0.0
    %336 = vmatprep.subr.mxu0 0.0
    %337 = vmatpush1.msra.mxu0 0.0
    %338 = vmatprep.subr.mxu0 0.0
    %339 = vmatpush1.msra.mxu0 0.0
    %340 = vmatprep.subr.mxu0 0.0
    %341 = vmatpush1.msra.mxu0 0.0
    %342 = vmatprep.subr.mxu0 0.0
    %343 = vmatpush1.msra.mxu0 0.0
    %344 = vmatprep.subr.mxu0 0.0
    %345 = vmatpush1.msra.mxu0 0.0
    %346 = vmatprep.subr.mxu0 0.0
    %347 = vmatpush1.msra.mxu0 0.0
    %348 = vmatprep.subr.mxu0 0.0
    %349 = vmatpush1.msra.mxu0 0.0
    %350 = vmatprep.subr.mxu0 0.0
    %351 = vmatpush1.msra.mxu0 0.0
    %352 = vmatprep.subr.mxu0 0.0
    %353 = vmatpush1.msra.mxu0 0.0
    %354 = vmatprep.subr.mxu0 0.0
    %355 = vmatpush1.msra.mxu0 0.0
    %356 = vmatprep.mubr.f32.mxu0 0.0
    %357 = vmatmul.mubr.f32.gmra.mrb[0].mxu0 %v287
    %v358 = vpop.f32.mrb[0].mxu0
    %v359 = vadd.f32 0.0, %v358
    %v360 = vpop.f32.mrb[0].mxu0
    %361 = vmatprep.mubr.f32.mxu0 0.0
    %362 = vmatmul.mubr.f32.gmra.mrb[0].mxu0 %v290
    %v363 = vpop.f32.mrb[0].mxu0
    %v364 = vadd.f32 0.0, %v363
    %v365 = vpop.f32.mrb[0].mxu0
    %366 = vdwg.mxu0
    %367 = vrot.lane.b32.xlu0 %v151, 120
    %v368 = vpop.permute.xlu0 %367
    %369 = vrot.lane.b32.xlu0 %v156, 120
    %v370 = vpop.permute.xlu0 %369
    %371 = vrot.lane.b32.xlu0 %v151, 88
    %v372 = vpop.permute.xlu0 %371
    %373 = vrot.lane.b32.xlu0 %v156, 88
    %v374 = vpop.permute.xlu0 %373
    %v375 = vsel %vm167, %v368, 0
    %v377 = vsel %vm167, %v370, 0
    %v379 = vsel %vm167, %v372, 0
    %v381 = vsel %vm167, %v374, 0
    %383 = vmatprep.subr.mxu0 0.0
    %384 = vmatpush1.xpose.msra.mxu0 %v379
    %385 = vmatprep.subr.mxu0 0.0
    %386 = vmatpush1.xpose.msra.mxu0 %v381
    %387 = vmatprep.subr.mxu0 0.0
    %388 = vmatpush1.xpose.msra.mxu0 0.0
    %389 = vmatprep.subr.mxu0 0.0
    %390 = vmatpush1.xpose.msra.mxu0 0.0
    %391 = vmatprep.subr.mxu0 0.0
    %392 = vmatpush1.xpose.msra.mxu0 0.0
    %393 = vmatprep.subr.mxu0 0.0
    %394 = vmatpush1.xpose.msra.mxu0 0.0
    %395 = vmatprep.subr.mxu0 0.0
    %396 = vmatpush1.xpose.msra.mxu0 0.0
    %397 = vmatprep.subr.mxu0 0.0
    %398 = vmatpush1.xpose.msra.mxu0 0.0
    %399 = vmatprep.subr.mxu0 0.0
    %400 = vmatpush1.xpose.msra.mxu0 0.0
    %401 = vmatprep.subr.mxu0 0.0
    %402 = vmatpush1.xpose.msra.mxu0 0.0
    %403 = vmatprep.subr.mxu0 0.0
    %404 = vmatpush1.xpose.msra.mxu0 0.0
    %405 = vmatprep.subr.mxu0 0.0
    %406 = vmatpush1.xpose.msra.mxu0 0.0
    %407 = vmatprep.subr.mxu0 0.0
    %408 = vmatpush1.xpose.msra.mxu0 0.0
    %409 = vmatprep.subr.mxu0 0.0
    %410 = vmatpush1.xpose.msra.mxu0 0.0
    %411 = vmatprep.subr.mxu0 0.0
    %412 = vmatpush1.xpose.msra.mxu0 0.0
    %413 = vmatprep.subr.mxu0 0.0
    %414 = vmatpush1.xpose.msra.mxu0 0.0
    %415 = vmatprep.subr.mxu0 0.0
    %416 = vmatpush1.xpose.msra.mxu0 0.0
    %417 = vmatprep.subr.mxu0 0.0
    %418 = vmatpush1.xpose.msra.mxu0 0.0
    %419 = vmatprep.subr.mxu0 0.0
    %420 = vmatpush1.xpose.msra.mxu0 0.0
    %421 = vmatprep.subr.mxu0 0.0
    %422 = vmatpush1.xpose.msra.mxu0 0.0
    %423 = vmatprep.subr.mxu0 0.0
    %424 = vmatpush1.xpose.msra.mxu0 0.0
    %425 = vmatprep.subr.mxu0 0.0
    %426 = vmatpush1.xpose.msra.mxu0 0.0
    %427 = vmatprep.subr.mxu0 0.0
    %428 = vmatpush1.xpose.msra.mxu0 0.0
    %429 = vmatprep.subr.mxu0 0.0
    %430 = vmatpush1.xpose.msra.mxu0 0.0
    %431 = vmatprep.subr.mxu0 0.0
    %432 = vmatpush1.xpose.msra.mxu0 0.0
    %433 = vmatprep.subr.mxu0 0.0
    %434 = vmatpush1.xpose.msra.mxu0 0.0
    %435 = vmatprep.subr.mxu0 0.0
    %436 = vmatpush1.xpose.msra.mxu0 0.0
    %437 = vmatprep.subr.mxu0 0.0
    %438 = vmatpush1.xpose.msra.mxu0 0.0
    %439 = vmatprep.subr.mxu0 0.0
    %440 = vmatpush1.xpose.msra.mxu0 0.0
    %441 = vmatprep.subr.mxu0 0.0
    %442 = vmatpush1.xpose.msra.mxu0 0.0
    %443 = vmatprep.subr.mxu0 0.0
    %444 = vmatpush1.xpose.msra.mxu0 0.0
    %445 = vmatprep.subr.mxu0 0.0
    %446 = vmatpush1.xpose.msra.mxu0 0.0
    %447 = vmatprep.mubr.f32.mxu0 0.0
    %448 = vmatmul.mubr.f32.gmra.mrb[0].mxu0 %v375
    %v449 = vpop.f32.mrb[0].mxu0
    %v450 = vadd.f32 0.0, %v449
    %v451 = vpop.f32.mrb[0].mxu0
    %452 = vmatprep.mubr.f32.mxu0 0.0
    %453 = vmatmul.mubr.f32.gmra.mrb[0].mxu0 %v377
    %v454 = vpop.f32.mrb[0].mxu0
    %v455 = vadd.f32 0.0, %v454
    %v456 = vpop.f32.mrb[0].mxu0
    %457 = vdwg.mxu0
    %v458 = vmul.f32 %v450, 0.35355338
    %v459 = vmul.f32 %v455, 0.35355338
    %v460 = vsel %vm253, -1e+09, %v458
    %v461 = vsel %vm254, -1e+09, %v459
    %v462 = vsel %vm257, %v460, -inf
    %463 = vmax.xlane.f32.xlu0 %v462
    %v464 = vpop.xlane.xlu0 %463
    %v465 = vsel %vm257, %v461, -inf
    %466 = vmax.xlane.f32.xlu0 %v465
    %v467 = vpop.xlane.xlu0 %466
    %v468 = vsub.f32 %v460, %v464
    %v469 = vsub.f32 %v461, %v467
    %v470 = vmul.f32 %v468, 1.442695
    %v471 = vpow.pop %v470
    %v472 = vmul.f32 %v469, 1.442695
    %v473 = vpow.pop %v472
    %v474 = vsel %vm257, %v471, 0.0
    %475 = vadd.xlane.f32.xlu0 %v474
    %v476 = vpop.xlane.xlu0 %475
    %v477 = vsel %vm257, %v473, 0.0
    %478 = vadd.xlane.f32.xlu0 %v477
    %v479 = vpop.xlane.xlu0 %478
    %v480 = vrcp.pop %v476
    %v481 = vmul.f32 %v471, %v480
    %v482 = vrcp.pop %v479
    %v483 = vmul.f32 %v473, %v482
    %484 = vrot.lane.b32.xlu0 %v151, 56
    %v485 = vpop.permute.xlu0 %484
    %486 = vrot.lane.b32.xlu0 %v156, 56
    %v487 = vpop.permute.xlu0 %486
    %v491 = vsel %vm257, %v481, 0
    %v494 = vsel %vm257, %v483, 0
    %496 = vmatprep.subr.mxu0 0.0
    %497 = vmatpush1.msra.mxu0 %v485
    %498 = vmatprep.subr.mxu0 0.0
    %499 = vmatpush1.msra.mxu0 %v487
    %500 = vmatprep.subr.mxu0 0.0
    %501 = vmatpush1.msra.mxu0 0.0
    %502 = vmatprep.subr.mxu0 0.0
    %503 = vmatpush1.msra.mxu0 0.0
    %504 = vmatprep.subr.mxu0 0.0
    %505 = vmatpush1.msra.mxu0 0.0
    %506 = vmatprep.subr.mxu0 0.0
    %507 = vmatpush1.msra.mxu0 0.0
    %508 = vmatprep.subr.mxu0 0.0
    %509 = vmatpush1.msra.mxu0 0.0
    %510 = vmatprep.subr.mxu0 0.0
    %511 = vmatpush1.msra.mxu0 0.0
    %512 = vmatprep.subr.mxu0 0.0
    %513 = vmatpush1.msra.mxu0 0.0
    %514 = vmatprep.subr.mxu0 0.0
    %515 = vmatpush1.msra.mxu0 0.0
    %516 = vmatprep.subr.mxu0 0.0
    %517 = vmatpush1.msra.mxu0 0.0
    %518 = vmatprep.subr.mxu0 0.0
    %519 = vmatpush1.msra.mxu0 0.0
    %520 = vmatprep.subr.mxu0 0.0
    %521 = vmatpush1.msra.mxu0 0.0
    %522 = vmatprep.subr.mxu0 0.0
    %523 = vmatpush1.msra.mxu0 0.0
    %524 = vmatprep.subr.mxu0 0.0
    %525 = vmatpush1.msra.mxu0 0.0
    %526 = vmatprep.subr.mxu0 0.0
    %527 = vmatpush1.msra.mxu0 0.0
    %528 = vmatprep.subr.mxu0 0.0
    %529 = vmatpush1.msra.mxu0 0.0
    %530 = vmatprep.subr.mxu0 0.0
    %531 = vmatpush1.msra.mxu0 0.0
    %532 = vmatprep.subr.mxu0 0.0
    %533 = vmatpush1.msra.mxu0 0.0
    %534 = vmatprep.subr.mxu0 0.0
    %535 = vmatpush1.msra.mxu0 0.0
    %536 = vmatprep.subr.mxu0 0.0
    %537 = vmatpush1.msra.mxu0 0.0
    %538 = vmatprep.subr.mxu0 0.0
    %539 = vmatpush1.msra.mxu0 0.0
    %540 = vmatprep.subr.mxu0 0.0
    %541 = vmatpush1.msra.mxu0 0.0
    %542 = vmatprep.subr.mxu0 0.0
    %543 = vmatpush1.msra.mxu0 0.0
    %544 = vmatprep.subr.mxu0 0.0
    %545 = vmatpush1.msra.mxu0 0.0
    %546 = vmatprep.subr.mxu0 0.0
    %547 = vmatpush1.msra.mxu0 0.0
    %548 = vmatprep.subr.mxu0 0.0
    %549 = vmatpush1.msra.mxu0 0.0
    %550 = vmatprep.subr.mxu0 0.0
    %551 = vmatpush1.msra.mxu0 0.0
    %552 = vmatprep.subr.mxu0 0.0
    %553 = vmatpush1.msra.mxu0 0.0
    %554 = vmatprep.subr.mxu0 0.0
    %555 = vmatpush1.msra.mxu0 0.0
    %556 = vmatprep.subr.mxu0 0.0
    %557 = vmatpush1.msra.mxu0 0.0
    %558 = vmatprep.subr.mxu0 0.0
    %559 = vmatpush1.msra.mxu0 0.0
    %560 = vmatprep.mubr.f32.mxu0 0.0
    %561 = vmatmul.mubr.f32.gmra.mrb[0].mxu0 %v491
    %v562 = vpop.f32.mrb[0].mxu0
    %v563 = vadd.f32 0.0, %v562
    %v564 = vpop.f32.mrb[0].mxu0
    %565 = vmatprep.mubr.f32.mxu0 0.0
    %566 = vmatmul.mubr.f32.gmra.mrb[0].mxu0 %v494
    %v567 = vpop.f32.mrb[0].mxu0
    %v568 = vadd.f32 0.0, %v567
    %v569 = vpop.f32.mrb[0].mxu0
    %570 = vdwg.mxu0
    %571 = vrot.lane.b32.xlu0 %v151, 112
    %v572 = vpop.permute.xlu0 %571
    %573 = vrot.lane.b32.xlu0 %v156, 112
    %v574 = vpop.permute.xlu0 %573
    %575 = vrot.lane.b32.xlu0 %v151, 80
    %v576 = vpop.permute.xlu0 %575
    %577 = vrot.lane.b32.xlu0 %v156, 80
    %v578 = vpop.permute.xlu0 %577
    %v579 = vsel %vm167, %v572, 0
    %v581 = vsel %vm167, %v574, 0
    %v583 = vsel %vm167, %v576, 0
    %v585 = vsel %vm167, %v578, 0
    %587 = vmatprep.subr.mxu0 0.0
    %588 = vmatpush1.xpose.msra.mxu0 %v583
    %589 = vmatprep.subr.mxu0 0.0
    %590 = vmatpush1.xpose.msra.mxu0 %v585
    %591 = vmatprep.subr.mxu0 0.0
    %592 = vmatpush1.xpose.msra.mxu0 0.0
    %593 = vmatprep.subr.mxu0 0.0
    %594 = vmatpush1.xpose.msra.mxu0 0.0
    %595 = vmatprep.subr.mxu0 0.0
    %596 = vmatpush1.xpose.msra.mxu0 0.0
    %597 = vmatprep.subr.mxu0 0.0
    %598 = vmatpush1.xpose.msra.mxu0 0.0
    %599 = vmatprep.subr.mxu0 0.0
    %600 = vmatpush1.xpose.msra.mxu0 0.0
    %601 = vmatprep.subr.mxu0 0.0
    %602 = vmatpush1.xpose.msra.mxu0 0.0
    %603 = vmatprep.subr.mxu0 0.0
    %604 = vmatpush1.xpose.msra.mxu0 0.0
    %605 = vmatprep.subr.mxu0 0.0
    %606 = vmatpush1.xpose.msra.mxu0 0.0
    %607 = vmatprep.subr.mxu0 0.0
    %608 = vmatpush1.xpose.msra.mxu0 0.0
    %609 = vmatprep.subr.mxu0 0.0
    %610 = vmatpush1.xpose.msra.mxu0 0.0
    %611 = vmatprep.subr.mxu0 0.0
    %612 = vmatpush1.xpose.msra.mxu0 0.0
    %613 = vmatprep.subr.mxu0 0.0
    %614 = vmatpush1.xpose.msra.mxu0 0.0
    %615 = vmatprep.subr.mxu0 0.0
    %616 = vmatpush1.xpose.msra.mxu0 0.0
    %617 = vmatprep.subr.mxu0 0.0
    %618 = vmatpush1.xpose.msra.mxu0 0.0
    %619 = vmatprep.subr.mxu0 0.0
    %620 = vmatpush1.xpose.msra.mxu0 0.0
    %621 = vmatprep.subr.mxu0 0.0
    %622 = vmatpush1.xpose.msra.mxu0 0.0
    %623 = vmatprep.subr.mxu0 0.0
    %624 = vmatpush1.xpose.msra.mxu0 0.0
    %625 = vmatprep.subr.mxu0 0.0
    %626 = vmatpush1.xpose.msra.mxu0 0.0
    %627 = vmatprep.subr.mxu0 0.0
    %628 = vmatpush1.xpose.msra.mxu0 0.0
    %629 = vmatprep.subr.mxu0 0.0
    %630 = vmatpush1.xpose.msra.mxu0 0.0
    %631 = vmatprep.subr.mxu0 0.0
    %632 = vmatpush1.xpose.msra.mxu0 0.0
    %633 = vmatprep.subr.mxu0 0.0
    %634 = vmatpush1.xpose.msra.mxu0 0.0
    %635 = vmatprep.subr.mxu0 0.0
    %636 = vmatpush1.xpose.msra.mxu0 0.0
    %637 = vmatprep.subr.mxu0 0.0
    %638 = vmatpush1.xpose.msra.mxu0 0.0
    %639 = vmatprep.subr.mxu0 0.0
    %640 = vmatpush1.xpose.msra.mxu0 0.0
    %641 = vmatprep.subr.mxu0 0.0
    %642 = vmatpush1.xpose.msra.mxu0 0.0
    %643 = vmatprep.subr.mxu0 0.0
    %644 = vmatpush1.xpose.msra.mxu0 0.0
    %645 = vmatprep.subr.mxu0 0.0
    %646 = vmatpush1.xpose.msra.mxu0 0.0
    %647 = vmatprep.subr.mxu0 0.0
    %648 = vmatpush1.xpose.msra.mxu0 0.0
    %649 = vmatprep.subr.mxu0 0.0
    %650 = vmatpush1.xpose.msra.mxu0 0.0
    %651 = vmatprep.mubr.f32.mxu0 0.0
    %652 = vmatmul.mubr.f32.gmra.mrb[0].mxu0 %v579
    %v653 = vpop.f32.mrb[0].mxu0
    %v654 = vadd.f32 0.0, %v653
    %v655 = vpop.f32.mrb[0].mxu0
    %656 = vmatprep.mubr.f32.mxu0 0.0
    %657 = vmatmul.mubr.f32.gmra.mrb[0].mxu0 %v581
    %v658 = vpop.f32.mrb[0].mxu0
    %v659 = vadd.f32 0.0, %v658
    %v660 = vpop.f32.mrb[0].mxu0
    %661 = vdwg.mxu0
    %v662 = vmul.f32 %v654, 0.35355338
    %v663 = vmul.f32 %v659, 0.35355338
    %v664 = vsel %vm253, -1e+09, %v662
    %v665 = vsel %vm254, -1e+09, %v663
    %v666 = vsel %vm257, %v664, -inf
    %667 = vmax.xlane.f32.xlu0 %v666
    %v668 = vpop.xlane.xlu0 %667
    %v669 = vsel %vm257, %v665, -inf
    %670 = vmax.xlane.f32.xlu0 %v669
    %v671 = vpop.xlane.xlu0 %670
    %v672 = vsub.f32 %v664, %v668
    %v673 = vsub.f32 %v665, %v671
    %v674 = vmul.f32 %v672, 1.442695
    %v675 = vpow.pop %v674
    %v676 = vmul.f32 %v673, 1.442695
    %v677 = vpow.pop %v676
    %v678 = vsel %vm257, %v675, 0.0
    %679 = vadd.xlane.f32.xlu0 %v678
    %v680 = vpop.xlane.xlu0 %679
    %v681 = vsel %vm257, %v677, 0.0
    %682 = vadd.xlane.f32.xlu0 %v681
    %v683 = vpop.xlane.xlu0 %682
    %v684 = vrcp.pop %v680
    %v685 = vmul.f32 %v675, %v684
    %v686 = vrcp.pop %v683
    %v687 = vmul.f32 %v677, %v686
    %688 = vrot.lane.b32.xlu0 %v151, 48
    %v689 = vpop.permute.xlu0 %688
    %690 = vrot.lane.b32.xlu0 %v156, 48
    %v691 = vpop.permute.xlu0 %690
    %v695 = vsel %vm257, %v685, 0
    %v698 = vsel %vm257, %v687, 0
    %700 = vmatprep.subr.mxu0 0.0
    %701 = vmatpush1.msra.mxu0 %v689
    %702 = vmatprep.subr.mxu0 0.0
    %703 = vmatpush1.msra.mxu0 %v691
    %704 = vmatprep.subr.mxu0 0.0
    %705 = vmatpush1.msra.mxu0 0.0
    %706 = vmatprep.subr.mxu0 0.0
    %707 = vmatpush1.msra.mxu0 0.0
    %708 = vmatprep.subr.mxu0 0.0
    %709 = vmatpush1.msra.mxu0 0.0
    %710 = vmatprep.subr.mxu0 0.0
    %711 = vmatpush1.msra.mxu0 0.0
    %712 = vmatprep.subr.mxu0 0.0
    %713 = vmatpush1.msra.mxu0 0.0
    %714 = vmatprep.subr.mxu0 0.0
    %715 = vmatpush1.msra.mxu0 0.0
    %716 = vmatprep.subr.mxu0 0.0
    %717 = vmatpush1.msra.mxu0 0.0
    %718 = vmatprep.subr.mxu0 0.0
    %719 = vmatpush1.msra.mxu0 0.0
    %720 = vmatprep.subr.mxu0 0.0
    %721 = vmatpush1.msra.mxu0 0.0
    %722 = vmatprep.subr.mxu0 0.0
    %723 = vmatpush1.msra.mxu0 0.0
    %724 = vmatprep.subr.mxu0 0.0
    %725 = vmatpush1.msra.mxu0 0.0
    %726 = vmatprep.subr.mxu0 0.0
    %727 = vmatpush1.msra.mxu0 0.0
    %728 = vmatprep.subr.mxu0 0.0
    %729 = vmatpush1.msra.mxu0 0.0
    %730 = vmatprep.subr.mxu0 0.0
    %731 = vmatpush1.msra.mxu0 0.0
    %732 = vmatprep.subr.mxu0 0.0
    %733 = vmatpush1.msra.mxu0 0.0
    %734 = vmatprep.subr.mxu0 0.0
    %735 = vmatpush1.msra.mxu0 0.0
    %736 = vmatprep.subr.mxu0 0.0
    %737 = vmatpush1.msra.mxu0 0.0
    %738 = vmatprep.subr.mxu0 0.0
    %739 = vmatpush1.msra.mxu0 0.0
    %740 = vmatprep.subr.mxu0 0.0
    %741 = vmatpush1.msra.mxu0 0.0
    %742 = vmatprep.subr.mxu0 0.0
    %743 = vmatpush1.msra.mxu0 0.0
    %744 = vmatprep.subr.mxu0 0.0
    %745 = vmatpush1.msra.mxu0 0.0
    %746 = vmatprep.subr.mxu0 0.0
    %747 = vmatpush1.msra.mxu0 0.0
    %748 = vmatprep.subr.mxu0 0.0
    %749 = vmatpush1.msra.mxu0 0.0
    %750 = vmatprep.subr.mxu0 0.0
    %751 = vmatpush1.msra.mxu0 0.0
    %752 = vmatprep.subr.mxu0 0.0
    %753 = vmatpush1.msra.mxu0 0.0
    %754 = vmatprep.subr.mxu0 0.0
    %755 = vmatpush1.msra.mxu0 0.0
    %756 = vmatprep.subr.mxu0 0.0
    %757 = vmatpush1.msra.mxu0 0.0
    %758 = vmatprep.subr.mxu0 0.0
    %759 = vmatpush1.msra.mxu0 0.0
    %760 = vmatprep.subr.mxu0 0.0
    %761 = vmatpush1.msra.mxu0 0.0
    %762 = vmatprep.subr.mxu0 0.0
    %763 = vmatpush1.msra.mxu0 0.0
    %764 = vmatprep.mubr.f32.mxu0 0.0
    %765 = vmatmul.mubr.f32.gmra.mrb[0].mxu0 %v695
    %v766 = vpop.f32.mrb[0].mxu0
    %v767 = vadd.f32 0.0, %v766
    %v768 = vpop.f32.mrb[0].mxu0
    %769 = vmatprep.mubr.f32.mxu0 0.0
    %770 = vmatmul.mubr.f32.gmra.mrb[0].mxu0 %v698
    %v771 = vpop.f32.mrb[0].mxu0
    %v772 = vadd.f32 0.0, %v771
    %v773 = vpop.f32.mrb[0].mxu0
    %774 = vdwg.mxu0
    %775 = vrot.lane.b32.xlu0 %v151, 104
    %v776 = vpop.permute.xlu0 %775
    %777 = vrot.lane.b32.xlu0 %v156, 104
    %v778 = vpop.permute.xlu0 %777
    %779 = vrot.lane.b32.xlu0 %v151, 72
    %v780 = vpop.permute.xlu0 %779
    %781 = vrot.lane.b32.xlu0 %v156, 72
    %v782 = vpop.permute.xlu0 %781
    %v783 = vsel %vm167, %v776, 0
    %v785 = vsel %vm167, %v778, 0
    %v787 = vsel %vm167, %v780, 0
    %v789 = vsel %vm167, %v782, 0
    %791 = vmatprep.subr.mxu0 0.0
    %792 = vmatpush1.xpose.msra.mxu0 %v787
    %793 = vmatprep.subr.mxu0 0.0
    %794 = vmatpush1.xpose.msra.mxu0 %v789
    %795 = vmatprep.subr.mxu0 0.0
    %796 = vmatpush1.xpose.msra.mxu0 0.0
    %797 = vmatprep.subr.mxu0 0.0
    %798 = vmatpush1.xpose.msra.mxu0 0.0
    %799 = vmatprep.subr.mxu0 0.0
    %800 = vmatpush1.xpose.msra.mxu0 0.0
    %801 = vmatprep.subr.mxu0 0.0
    %802 = vmatpush1.xpose.msra.mxu0 0.0
    %803 = vmatprep.subr.mxu0 0.0
    %804 = vmatpush1.xpose.msra.mxu0 0.0
    %805 = vmatprep.subr.mxu0 0.0
    %806 = vmatpush1.xpose.msra.mxu0 0.0
    %807 = vmatprep.subr.mxu0 0.0
    %808 = vmatpush1.xpose.msra.mxu0 0.0
    %809 = vmatprep.subr.mxu0 0.0
    %810 = vmatpush1.xpose.msra.mxu0 0.0
    %811 = vmatprep.subr.mxu0 0.0
    %812 = vmatpush1.xpose.msra.mxu0 0.0
    %813 = vmatprep.subr.mxu0 0.0
    %814 = vmatpush1.xpose.msra.mxu0 0.0
    %815 = vmatprep.subr.mxu0 0.0
    %816 = vmatpush1.xpose.msra.mxu0 0.0
    %817 = vmatprep.subr.mxu0 0.0
    %818 = vmatpush1.xpose.msra.mxu0 0.0
    %819 = vmatprep.subr.mxu0 0.0
    %820 = vmatpush1.xpose.msra.mxu0 0.0
    %821 = vmatprep.subr.mxu0 0.0
    %822 = vmatpush1.xpose.msra.mxu0 0.0
    %823 = vmatprep.subr.mxu0 0.0
    %824 = vmatpush1.xpose.msra.mxu0 0.0
    %825 = vmatprep.subr.mxu0 0.0
    %826 = vmatpush1.xpose.msra.mxu0 0.0
    %827 = vmatprep.subr.mxu0 0.0
    %828 = vmatpush1.xpose.msra.mxu0 0.0
    %829 = vmatprep.subr.mxu0 0.0
    %830 = vmatpush1.xpose.msra.mxu0 0.0
    %831 = vmatprep.subr.mxu0 0.0
    %832 = vmatpush1.xpose.msra.mxu0 0.0
    %833 = vmatprep.subr.mxu0 0.0
    %834 = vmatpush1.xpose.msra.mxu0 0.0
    %835 = vmatprep.subr.mxu0 0.0
    %836 = vmatpush1.xpose.msra.mxu0 0.0
    %837 = vmatprep.subr.mxu0 0.0
    %838 = vmatpush1.xpose.msra.mxu0 0.0
    %839 = vmatprep.subr.mxu0 0.0
    %840 = vmatpush1.xpose.msra.mxu0 0.0
    %841 = vmatprep.subr.mxu0 0.0
    %842 = vmatpush1.xpose.msra.mxu0 0.0
    %843 = vmatprep.subr.mxu0 0.0
    %844 = vmatpush1.xpose.msra.mxu0 0.0
    %845 = vmatprep.subr.mxu0 0.0
    %846 = vmatpush1.xpose.msra.mxu0 0.0
    %847 = vmatprep.subr.mxu0 0.0
    %848 = vmatpush1.xpose.msra.mxu0 0.0
    %849 = vmatprep.subr.mxu0 0.0
    %850 = vmatpush1.xpose.msra.mxu0 0.0
    %851 = vmatprep.subr.mxu0 0.0
    %852 = vmatpush1.xpose.msra.mxu0 0.0
    %853 = vmatprep.subr.mxu0 0.0
    %854 = vmatpush1.xpose.msra.mxu0 0.0
    %855 = vmatprep.mubr.f32.mxu0 0.0
    %856 = vmatmul.mubr.f32.gmra.mrb[0].mxu0 %v783
    %v857 = vpop.f32.mrb[0].mxu0
    %v858 = vadd.f32 0.0, %v857
    %v859 = vpop.f32.mrb[0].mxu0
    %860 = vmatprep.mubr.f32.mxu0 0.0
    %861 = vmatmul.mubr.f32.gmra.mrb[0].mxu0 %v785
    %v862 = vpop.f32.mrb[0].mxu0
    %v863 = vadd.f32 0.0, %v862
    %v864 = vpop.f32.mrb[0].mxu0
    %865 = vdwg.mxu0
    %v866 = vmul.f32 %v858, 0.35355338
    %v867 = vmul.f32 %v863, 0.35355338
    %v868 = vsel %vm253, -1e+09, %v866
    %v869 = vsel %vm254, -1e+09, %v867
    %v870 = vsel %vm257, %v868, -inf
    %871 = vmax.xlane.f32.xlu0 %v870
    %v872 = vpop.xlane.xlu0 %871
    %v873 = vsel %vm257, %v869, -inf
    %874 = vmax.xlane.f32.xlu0 %v873
    %v875 = vpop.xlane.xlu0 %874
    %v876 = vsub.f32 %v868, %v872
    %v877 = vsub.f32 %v869, %v875
    %v878 = vmul.f32 %v876, 1.442695
    %v879 = vpow.pop %v878
    %v880 = vmul.f32 %v877, 1.442695
    %v881 = vpow.pop %v880
    %v882 = vsel %vm257, %v879, 0.0
    %883 = vadd.xlane.f32.xlu0 %v882
    %v884 = vpop.xlane.xlu0 %883
    %v885 = vsel %vm257, %v881, 0.0
    %886 = vadd.xlane.f32.xlu0 %v885
    %v887 = vpop.xlane.xlu0 %886
    %v888 = vrcp.pop %v884
    %v889 = vmul.f32 %v879, %v888
    %v890 = vrcp.pop %v887
    %v891 = vmul.f32 %v881, %v890
    %892 = vrot.lane.b32.xlu0 %v151, 40
    %v893 = vpop.permute.xlu0 %892
    %894 = vrot.lane.b32.xlu0 %v156, 40
    %v895 = vpop.permute.xlu0 %894
    %v899 = vsel %vm257, %v889, 0
    %v902 = vsel %vm257, %v891, 0
    %904 = vmatprep.subr.mxu0 0.0
    %905 = vmatpush1.msra.mxu0 %v893
    %906 = vmatprep.subr.mxu0 0.0
    %907 = vmatpush1.msra.mxu0 %v895
    %908 = vmatprep.subr.mxu0 0.0
    %909 = vmatpush1.msra.mxu0 0.0
    %910 = vmatprep.subr.mxu0 0.0
    %911 = vmatpush1.msra.mxu0 0.0
    %912 = vmatprep.subr.mxu0 0.0
    %913 = vmatpush1.msra.mxu0 0.0
    %914 = vmatprep.subr.mxu0 0.0
    %915 = vmatpush1.msra.mxu0 0.0
    %916 = vmatprep.subr.mxu0 0.0
    %917 = vmatpush1.msra.mxu0 0.0
    %918 = vmatprep.subr.mxu0 0.0
    %919 = vmatpush1.msra.mxu0 0.0
    %920 = vmatprep.subr.mxu0 0.0
    %921 = vmatpush1.msra.mxu0 0.0
    %922 = vmatprep.subr.mxu0 0.0
    %923 = vmatpush1.msra.mxu0 0.0
    %924 = vmatprep.subr.mxu0 0.0
    %925 = vmatpush1.msra.mxu0 0.0
    %926 = vmatprep.subr.mxu0 0.0
    %927 = vmatpush1.msra.mxu0 0.0
    %928 = vmatprep.subr.mxu0 0.0
    %929 = vmatpush1.msra.mxu0 0.0
    %930 = vmatprep.subr.mxu0 0.0
    %931 = vmatpush1.msra.mxu0 0.0
    %932 = vmatprep.subr.mxu0 0.0
    %933 = vmatpush1.msra.mxu0 0.0
    %934 = vmatprep.subr.mxu0 0.0
    %935 = vmatpush1.msra.mxu0 0.0
    %936 = vmatprep.subr.mxu0 0.0
    %937 = vmatpush1.msra.mxu0 0.0
    %938 = vmatprep.subr.mxu0 0.0
    %939 = vmatpush1.msra.mxu0 0.0
    %940 = vmatprep.subr.mxu0 0.0
    %941 = vmatpush1.msra.mxu0 0.0
    %942 = vmatprep.subr.mxu0 0.0
    %943 = vmatpush1.msra.mxu0 0.0
    %944 = vmatprep.subr.mxu0 0.0
    %945 = vmatpush1.msra.mxu0 0.0
    %946 = vmatprep.subr.mxu0 0.0
    %947 = vmatpush1.msra.mxu0 0.0
    %948 = vmatprep.subr.mxu0 0.0
    %949 = vmatpush1.msra.mxu0 0.0
    %950 = vmatprep.subr.mxu0 0.0
    %951 = vmatpush1.msra.mxu0 0.0
    %952 = vmatprep.subr.mxu0 0.0
    %953 = vmatpush1.msra.mxu0 0.0
    %954 = vmatprep.subr.mxu0 0.0
    %955 = vmatpush1.msra.mxu0 0.0
    %956 = vmatprep.subr.mxu0 0.0
    %957 = vmatpush1.msra.mxu0 0.0
    %958 = vmatprep.subr.mxu0 0.0
    %959 = vmatpush1.msra.mxu0 0.0
    %960 = vmatprep.subr.mxu0 0.0
    %961 = vmatpush1.msra.mxu0 0.0
    %962 = vmatprep.subr.mxu0 0.0
    %963 = vmatpush1.msra.mxu0 0.0
    %964 = vmatprep.subr.mxu0 0.0
    %965 = vmatpush1.msra.mxu0 0.0
    %966 = vmatprep.subr.mxu0 0.0
    %967 = vmatpush1.msra.mxu0 0.0
    %968 = vmatprep.mubr.f32.mxu0 0.0
    %969 = vmatmul.mubr.f32.gmra.mrb[0].mxu0 %v899
    %v970 = vpop.f32.mrb[0].mxu0
    %v971 = vadd.f32 0.0, %v970
    %v972 = vpop.f32.mrb[0].mxu0
    %973 = vmatprep.mubr.f32.mxu0 0.0
    %974 = vmatmul.mubr.f32.gmra.mrb[0].mxu0 %v902
    %v975 = vpop.f32.mrb[0].mxu0
    %v976 = vadd.f32 0.0, %v975
    %v977 = vpop.f32.mrb[0].mxu0
    %978 = vdwg.mxu0
    %981 = vrot.lane.b32.xlu0 %v563, 8
    %v982 = vpop.permute.xlu0 %981
    %983 = vrot.lane.b32.xlu0 %v568, 8
    %v984 = vpop.permute.xlu0 %983
    %989 = vrot.lane.b32.xlu0 %v767, 16
    %v990 = vpop.permute.xlu0 %989
    %991 = vrot.lane.b32.xlu0 %v772, 16
    %v992 = vpop.permute.xlu0 %991
    %997 = vrot.lane.b32.xlu0 %v971, 24
    %v998 = vpop.permute.xlu0 %997
    %999 = vrot.lane.b32.xlu0 %v976, 24
    %v1000 = vpop.permute.xlu0 %999
    %v1003 = vsel %vm167, %v359, %v982
    %v1004 = vsel %vm167, %v364, %v984
    %v1005 = vsel %vm257, %v1003, %v990
    %v1006 = vsel %vm257, %v1004, %v992
    %vm1007 = vcmask 195584
    %v1008 = vsel %vm1007, %v1005, %v998
    %v1009 = vsel %vm1007, %v1006, %v1000
    %v1010 = vld [vmem:[%s4] sm:$0xff]
    %v1011 = vld [vmem:[%s4 + $0x8] sm:$0xff]
    %v1012 = vld [vmem:[%s4 + $0x10] sm:$0xff]
    %v1013 = vld [vmem:[%s4 + $0x18] sm:$0xff]
    %v1014 = vld [vmem:[%s5] sm:$0x1]
    %v1016 = vlaneseq
    %v1017 = vshrl.u32 %v1016, 7
    %v1018 = vsub.s32 0, %v1017
    %v1019 = vrot.slane %v1014, %v1018
    %v1022 = vsel %vm77, %v1008, 0
    %v1025 = vsel %vm77, %v1009, 0
    %1027 = vmatprep.subr.mxu0 0.0
    %1028 = vmatpush1.msra.mxu0 %v1010
    %1029 = vmatprep.subr.mxu0 0.0
    %1030 = vmatpush1.msra.mxu0 %v1011
    %1031 = vmatprep.subr.mxu0 0.0
    %1032 = vmatpush1.msra.mxu0 %v1012
    %1033 = vmatprep.subr.mxu0 0.0
    %1034 = vmatpush1.msra.mxu0 %v1013
    %1035 = vmatprep.subr.mxu0 0.0
    %1036 = vmatpush1.msra.mxu0 0.0
    %1037 = vmatprep.subr.mxu0 0.0
    %1038 = vmatpush1.msra.mxu0 0.0
    %1039 = vmatprep.subr.mxu0 0.0
    %1040 = vmatpush1.msra.mxu0 0.0
    %1041 = vmatprep.subr.mxu0 0.0
    %1042 = vmatpush1.msra.mxu0 0.0
    %1043 = vmatprep.subr.mxu0 0.0
    %1044 = vmatpush1.msra.mxu0 0.0
    %1045 = vmatprep.subr.mxu0 0.0
    %1046 = vmatpush1.msra.mxu0 0.0
    %1047 = vmatprep.subr.mxu0 0.0
    %1048 = vmatpush1.msra.mxu0 0.0
    %1049 = vmatprep.subr.mxu0 0.0
    %1050 = vmatpush1.msra.mxu0 0.0
    %1051 = vmatprep.subr.mxu0 0.0
    %1052 = vmatpush1.msra.mxu0 0.0
    %1053 = vmatprep.subr.mxu0 0.0
    %1054 = vmatpush1.msra.mxu0 0.0
    %1055 = vmatprep.subr.mxu0 0.0
    %1056 = vmatpush1.msra.mxu0 0.0
    %1057 = vmatprep.subr.mxu0 0.0
    %1058 = vmatpush1.msra.mxu0 0.0
    %1059 = vmatprep.subr.mxu0 0.0
    %1060 = vmatpush1.msra.mxu0 0.0
    %1061 = vmatprep.subr.mxu0 0.0
    %1062 = vmatpush1.msra.mxu0 0.0
    %1063 = vmatprep.subr.mxu0 0.0
    %1064 = vmatpush1.msra.mxu0 0.0
    %1065 = vmatprep.subr.mxu0 0.0
    %1066 = vmatpush1.msra.mxu0 0.0
    %1067 = vmatprep.subr.mxu0 0.0
    %1068 = vmatpush1.msra.mxu0 0.0
    %1069 = vmatprep.subr.mxu0 0.0
    %1070 = vmatpush1.msra.mxu0 0.0
    %1071 = vmatprep.subr.mxu0 0.0
    %1072 = vmatpush1.msra.mxu0 0.0
    %1073 = vmatprep.subr.mxu0 0.0
    %1074 = vmatpush1.msra.mxu0 0.0
    %1075 = vmatprep.subr.mxu0 0.0
    %1076 = vmatpush1.msra.mxu0 0.0
    %1077 = vmatprep.subr.mxu0 0.0
    %1078 = vmatpush1.msra.mxu0 0.0
    %1079 = vmatprep.subr.mxu0 0.0
    %1080 = vmatpush1.msra.mxu0 0.0
    %1081 = vmatprep.subr.mxu0 0.0
    %1082 = vmatpush1.msra.mxu0 0.0
    %1083 = vmatprep.subr.mxu0 0.0
    %1084 = vmatpush1.msra.mxu0 0.0
    %1085 = vmatprep.subr.mxu0 0.0
    %1086 = vmatpush1.msra.mxu0 0.0
    %1087 = vmatprep.subr.mxu0 0.0
    %1088 = vmatpush1.msra.mxu0 0.0
    %1089 = vmatprep.subr.mxu0 0.0
    %1090 = vmatpush1.msra.mxu0 0.0
    %1091 = vmatprep.mubr.f32.mxu0 0.0
    %1092 = vmatmul.mubr.f32.gmra.mrb[0].mxu0 %v1022
    %v1093 = vpop.f32.mrb[0].mxu0
    %v1094 = vadd.f32 %v1019, %v1093
    %v1095 = vpop.f32.mrb[0].mxu0
    %1096 = vmatprep.mubr.f32.mxu0 0.0
    %1097 = vmatmul.mubr.f32.gmra.mrb[0].mxu0 %v1025
    %v1098 = vpop.f32.mrb[0].mxu0
    %v1099 = vadd.f32 %v1019, %v1098
    %v1100 = vpop.f32.mrb[0].mxu0
    %1101 = vdwg.mxu0
    %v1102 = vadd.f32 %v64, %v1094
    %v1103 = vadd.f32 %v65, %v1099
    %v1104 = vsel %vm77, %v1102, 0.0
    %v1105 = vsel %vm77, %v1103, 0.0
    %v1106 = vadd.f32 %v1104, %v1105
    %1107 = vadd.xlane.f32.xlu0 %v1106
    %v1108 = vpop.xlane.xlu0 %1107
    %v1109 = vrot.slane %v1108, 4
    %v1110 = vadd.f32 %v1108, %v1109
    %v1111 = vrot.slane %v1110, 2
    %v1112 = vadd.f32 %v1110, %v1111
    %v1113 = vrot.slane %v1112, 1
    %v1114 = vadd.f32 %v1112, %v1113
    %s1115 = vtos %v1114
    %v1116 = vrcp.pop 512.0
    %s1117 = vtos %v1116
    %s1118 = smul.f32 %s1115, %s1117
    %v1119 = vstv %s1118
    %v1120 = vsub.f32 %v1102, %v1119
    %v1121 = vsub.f32 %v1103, %v1119
    %v1122 = vmul.f32 %v1120, %v1120
    %v1123 = vmul.f32 %v1121, %v1121
    %v1124 = vsel %vm77, %v1122, 0.0
    %v1125 = vsel %vm77, %v1123, 0.0
    %v1126 = vadd.f32 %v1124, %v1125
    %1127 = vadd.xlane.f32.xlu0 %v1126
    %v1128 = vpop.xlane.xlu0 %1127
    %v1129 = vrot.slane %v1128, 4
    %v1130 = vadd.f32 %v1128, %v1129
    %v1131 = vrot.slane %v1130, 2
    %v1132 = vadd.f32 %v1130, %v1131
    %v1133 = vrot.slane %v1132, 1
    %v1134 = vadd.f32 %v1132, %v1133
    %s1135 = vtos %v1134
    %v1136 = vrcp.pop 512.0
    %s1137 = vtos %v1136
    %s1138 = smul.f32 %s1135, %s1137
    %s1139 = sadd.f32 %s1138, 1e-05
    %v1140 = vstv %s1139
    %v1141 = vrsqrt.pop %v1140
    %s1142 = vtos %v1141
    %v1143 = vstv %s1142
    %v1144 = vmul.f32 %v1120, %v1143
    %v1145 = vmul.f32 %v1121, %v1143
    %v1146 = vld [vmem:[%s6] sm:$0xff]
    %v1147 = vld [vmem:[%s6 + $0x8] sm:$0xff]
    %v1148 = vld [vmem:[%s6 + $0x10] sm:$0xff]
    %v1149 = vld [vmem:[%s6 + $0x18] sm:$0xff]
    %v1150 = vld [vmem:[%s7] sm:$0x1]
    %v1152 = vlaneseq
    %v1153 = vshrl.u32 %v1152, 7
    %v1154 = vsub.s32 0, %v1153
    %v1155 = vrot.slane %v1150, %v1154
    %v1158 = vsel %vm77, %v1144, 0
    %v1161 = vsel %vm77, %v1145, 0
    %1163 = vmatprep.subr.mxu0 0.0
    %1164 = vmatpush1.msra.mxu0 %v1146
    %1165 = vmatprep.subr.mxu0 0.0
    %1166 = vmatpush1.msra.mxu0 %v1147
    %1167 = vmatprep.subr.mxu0 0.0
    %1168 = vmatpush1.msra.mxu0 %v1148
    %1169 = vmatprep.subr.mxu0 0.0
    %1170 = vmatpush1.msra.mxu0 %v1149
    %1171 = vmatprep.subr.mxu0 0.0
    %1172 = vmatpush1.msra.mxu0 0.0
    %1173 = vmatprep.subr.mxu0 0.0
    %1174 = vmatpush1.msra.mxu0 0.0
    %1175 = vmatprep.subr.mxu0 0.0
    %1176 = vmatpush1.msra.mxu0 0.0
    %1177 = vmatprep.subr.mxu0 0.0
    %1178 = vmatpush1.msra.mxu0 0.0
    %1179 = vmatprep.subr.mxu0 0.0
    %1180 = vmatpush1.msra.mxu0 0.0
    %1181 = vmatprep.subr.mxu0 0.0
    %1182 = vmatpush1.msra.mxu0 0.0
    %1183 = vmatprep.subr.mxu0 0.0
    %1184 = vmatpush1.msra.mxu0 0.0
    %1185 = vmatprep.subr.mxu0 0.0
    %1186 = vmatpush1.msra.mxu0 0.0
    %1187 = vmatprep.subr.mxu0 0.0
    %1188 = vmatpush1.msra.mxu0 0.0
    %1189 = vmatprep.subr.mxu0 0.0
    %1190 = vmatpush1.msra.mxu0 0.0
    %1191 = vmatprep.subr.mxu0 0.0
    %1192 = vmatpush1.msra.mxu0 0.0
    %1193 = vmatprep.subr.mxu0 0.0
    %1194 = vmatpush1.msra.mxu0 0.0
    %1195 = vmatprep.subr.mxu0 0.0
    %1196 = vmatpush1.msra.mxu0 0.0
    %1197 = vmatprep.subr.mxu0 0.0
    %1198 = vmatpush1.msra.mxu0 0.0
    %1199 = vmatprep.subr.mxu0 0.0
    %1200 = vmatpush1.msra.mxu0 0.0
    %1201 = vmatprep.subr.mxu0 0.0
    %1202 = vmatpush1.msra.mxu0 0.0
    %1203 = vmatprep.subr.mxu0 0.0
    %1204 = vmatpush1.msra.mxu0 0.0
    %1205 = vmatprep.subr.mxu0 0.0
    %1206 = vmatpush1.msra.mxu0 0.0
    %1207 = vmatprep.subr.mxu0 0.0
    %1208 = vmatpush1.msra.mxu0 0.0
    %1209 = vmatprep.subr.mxu0 0.0
    %1210 = vmatpush1.msra.mxu0 0.0
    %1211 = vmatprep.subr.mxu0 0.0
    %1212 = vmatpush1.msra.mxu0 0.0
    %1213 = vmatprep.subr.mxu0 0.0
    %1214 = vmatpush1.msra.mxu0 0.0
    %1215 = vmatprep.subr.mxu0 0.0
    %1216 = vmatpush1.msra.mxu0 0.0
    %1217 = vmatprep.subr.mxu0 0.0
    %1218 = vmatpush1.msra.mxu0 0.0
    %1219 = vmatprep.subr.mxu0 0.0
    %1220 = vmatpush1.msra.mxu0 0.0
    %1221 = vmatprep.subr.mxu0 0.0
    %1222 = vmatpush1.msra.mxu0 0.0
    %1223 = vmatprep.subr.mxu0 0.0
    %1224 = vmatpush1.msra.mxu0 0.0
    %1225 = vmatprep.subr.mxu0 0.0
    %1226 = vmatpush1.msra.mxu0 0.0
    %1227 = vmatprep.mubr.f32.mxu0 0.0
    %1228 = vmatmul.mubr.f32.gmra.mrb[0].mxu0 %v1158
    %v1229 = vpop.f32.mrb[0].mxu0
    %v1230 = vadd.f32 %v1155, %v1229
    %v1231 = vpop.f32.mrb[0].mxu0
    %1232 = vmatprep.mubr.f32.mxu0 0.0
    %1233 = vmatmul.mubr.f32.gmra.mrb[0].mxu0 %v1161
    %v1234 = vpop.f32.mrb[0].mxu0
    %v1235 = vadd.f32 %v1155, %v1234
    %v1236 = vpop.f32.mrb[0].mxu0
    %1237 = vdwg.mxu0
    %v1238 = vmax.f32 %v1230, 0.0
    %v1239 = vmax.f32 %v1235, 0.0
    %v1240 = vld [vmem:[%s8] sm:$0xff]
    %v1241 = vld [vmem:[%s8 + $0x8] sm:$0xff]
    %v1242 = vld [vmem:[%s8 + $0x10] sm:$0xff]
    %v1243 = vld [vmem:[%s8 + $0x18] sm:$0xff]
    %v1244 = vld [vmem:[%s8 + $0x20] sm:$0xff]
    %v1245 = vld [vmem:[%s8 + $0x28] sm:$0xff]
    %v1246 = vld [vmem:[%s8 + $0x30] sm:$0xff]
    %v1247 = vld [vmem:[%s8 + $0x38] sm:$0xff]
    %v1248 = vld [vmem:[%s9] sm:$0x1]
    %v1250 = vlaneseq
    %v1251 = vshrl.u32 %v1250, 7
    %v1252 = vsub.s32 0, %v1251
    %v1253 = vrot.slane %v1248, %v1252
    %vm1255 = vcmask 523264
    %v1257 = vsel %vm1255, %v1238, 0
    %v1260 = vsel %vm1255, %v1239, 0
    %1262 = vmatprep.subr.mxu0 0.0
    %1263 = vmatpush1.msra.mxu0 %v1240
    %1264 = vmatprep.subr.mxu0 0.0
    %1265 = vmatpush1.msra.mxu0 %v1241
    %1266 = vmatprep.subr.mxu0 0.0
    %1267 = vmatpush1.msra.mxu0 %v1242
    %1268 = vmatprep.subr.mxu0 0.0
    %1269 = vmatpush1.msra.mxu0 %v1243
    %1270 = vmatprep.subr.mxu0 0.0
    %1271 = vmatpush1.msra.mxu0 %v1244
    %1272 = vmatprep.subr.mxu0 0.0
    %1273 = vmatpush1.msra.mxu0 %v1245
    %1274 = vmatprep.subr.mxu0 0.0
    %1275 = vmatpush1.msra.mxu0 %v1246
    %1276 = vmatprep.subr.mxu0 0.0
    %1277 = vmatpush1.msra.mxu0 %v1247
    %1278 = vmatprep.subr.mxu0 0.0
    %1279 = vmatpush1.msra.mxu0 0.0
    %1280 = vmatprep.subr.mxu0 0.0
    %1281 = vmatpush1.msra.mxu0 0.0
    %1282 = vmatprep.subr.mxu0 0.0
    %1283 = vmatpush1.msra.mxu0 0.0
    %1284 = vmatprep.subr.mxu0 0.0
    %1285 = vmatpush1.msra.mxu0 0.0
    %1286 = vmatprep.subr.mxu0 0.0
    %1287 = vmatpush1.msra.mxu0 0.0
    %1288 = vmatprep.subr.mxu0 0.0
    %1289 = vmatpush1.msra.mxu0 0.0
    %1290 = vmatprep.subr.mxu0 0.0
    %1291 = vmatpush1.msra.mxu0 0.0
    %1292 = vmatprep.subr.mxu0 0.0
    %1293 = vmatpush1.msra.mxu0 0.0
    %1294 = vmatprep.subr.mxu0 0.0
    %1295 = vmatpush1.msra.mxu0 0.0
    %1296 = vmatprep.subr.mxu0 0.0
    %1297 = vmatpush1.msra.mxu0 0.0
    %1298 = vmatprep.subr.mxu0 0.0
    %1299 = vmatpush1.msra.mxu0 0.0
    %1300 = vmatprep.subr.mxu0 0.0
    %1301 = vmatpush1.msra.mxu0 0.0
    %1302 = vmatprep.subr.mxu0 0.0
    %1303 = vmatpush1.msra.mxu0 0.0
    %1304 = vmatprep.subr.mxu0 0.0
    %1305 = vmatpush1.msra.mxu0 0.0
    %1306 = vmatprep.subr.mxu0 0.0
    %1307 = vmatpush1.msra.mxu0 0.0
    %1308 = vmatprep.subr.mxu0 0.0
    %1309 = vmatpush1.msra.mxu0 0.0
    %1310 = vmatprep.subr.mxu0 0.0
    %1311 = vmatpush1.msra.mxu0 0.0
    %1312 = vmatprep.subr.mxu0 0.0
    %1313 = vmatpush1.msra.mxu0 0.0
    %1314 = vmatprep.subr.mxu0 0.0
    %1315 = vmatpush1.msra.mxu0 0.0
    %1316 = vmatprep.subr.mxu0 0.0
    %1317 = vmatpush1.msra.mxu0 0.0
    %1318 = vmatprep.subr.mxu0 0.0
    %1319 = vmatpush1.msra.mxu0 0.0
    %1320 = vmatprep.subr.mxu0 0.0
    %1321 = vmatpush1.msra.mxu0 0.0
    %1322 = vmatprep.subr.mxu0 0.0
    %1323 = vmatpush1.msra.mxu0 0.0
    %1324 = vmatprep.subr.mxu0 0.0
    %1325 = vmatpush1.msra.mxu0 0.0
    %1326 = vmatprep.mubr.f32.mxu0 0.0
    %1327 = vmatmul.mubr.f32.gmra.mrb[0].mxu0 %v1257
    %v1328 = vpop.f32.mrb[0].mxu0
    %v1329 = vadd.f32 %v1253, %v1328
    %v1330 = vpop.f32.mrb[0].mxu0
    %1331 = vmatprep.mubr.f32.mxu0 0.0
    %1332 = vmatmul.mubr.f32.gmra.mrb[0].mxu0 %v1260
    %v1333 = vpop.f32.mrb[0].mxu0
    %v1334 = vadd.f32 %v1253, %v1333
    %v1335 = vpop.f32.mrb[0].mxu0
    %1336 = vdwg.mxu0
    %v1337 = vadd.f32 %v1144, %v1329
    %v1338 = vadd.f32 %v1145, %v1334
    %v1339 = vsel %vm77, %v1337, 0.0
    %v1340 = vsel %vm77, %v1338, 0.0
    %v1341 = vadd.f32 %v1339, %v1340
    %1342 = vadd.xlane.f32.xlu0 %v1341
    %v1343 = vpop.xlane.xlu0 %1342
    %v1344 = vrot.slane %v1343, 4
    %v1345 = vadd.f32 %v1343, %v1344
    %v1346 = vrot.slane %v1345, 2
    %v1347 = vadd.f32 %v1345, %v1346
    %v1348 = vrot.slane %v1347, 1
    %v1349 = vadd.f32 %v1347, %v1348
    %s1350 = vtos %v1349
    %v1351 = vrcp.pop 512.0
    %s1352 = vtos %v1351
    %s1353 = smul.f32 %s1350, %s1352
    %v1354 = vstv %s1353
    %v1355 = vsub.f32 %v1337, %v1354
    %v1356 = vsub.f32 %v1338, %v1354
    %v1357 = vmul.f32 %v1355, %v1355
    %v1358 = vmul.f32 %v1356, %v1356
    %v1359 = vsel %vm77, %v1357, 0.0
    %v1360 = vsel %vm77, %v1358, 0.0
    %v1361 = vadd.f32 %v1359, %v1360
    %1362 = vadd.xlane.f32.xlu0 %v1361
    %v1363 = vpop.xlane.xlu0 %1362
    %v1364 = vrot.slane %v1363, 4
    %v1365 = vadd.f32 %v1363, %v1364
    %v1366 = vrot.slane %v1365, 2
    %v1367 = vadd.f32 %v1365, %v1366
    %v1368 = vrot.slane %v1367, 1
    %v1369 = vadd.f32 %v1367, %v1368
    %s1370 = vtos %v1369
    %v1371 = vrcp.pop 512.0
    %s1372 = vtos %v1371
    %s1373 = smul.f32 %s1370, %s1372
    %s1374 = sadd.f32 %s1373, 1e-05
    %v1375 = vstv %s1374
    %v1376 = vrsqrt.pop %v1375
    %s1377 = vtos %v1376
    %v1378 = vstv %s1377
    %v1379 = vmul.f32 %v1355, %v1378
    %v1380 = vmul.f32 %v1356, %v1378
    %1381 = vst.msk [vmem:[#allocation7] sm:$0xff] %vm77, %v1379
    %1382 = vst.msk [vmem:[#allocation7 + $0x8] sm:$0xff] %vm77, %v1380
    // Predicated region
    $region50: #{tpu_custom_call.1} parent=1 // pred_check
      _
    $region51: #{tpu_custom_call.1} parent=1 // pred_check_branch
      %1384 = sbr.rel (0) target = $region53
    $region52: #{tpu_custom_call.1} parent=1 // pred_region
      %s1386 = ssub.s32 256, 256
      %1387 = vsyncadd [#allocation4], %s1386
      %s1388 = sshll.u32 [#allocation7], 4
      %s1389 = int_to_ptr.vmem [resolvable:$true] %s1388
      %1394 = dma.vmem_to_hbm [thread:$0]  %s1389, 256, %s10, [#allocation4], 128, 128, 8
    $region53: #{tpu_custom_call.1} parent=1 // pred_fallthru
      _
    // Predicated region
    $region54: #{tpu_custom_call.1} parent=1 // pred_check
      _
    $region55: #{tpu_custom_call.1} parent=1 // pred_check_branch
      %1396 = sbr.rel (0) target = $region57
    $region56: #{tpu_custom_call.1} parent=1 // pred_region
      %1397 = dma.done [#allocation4], 256
    $region57: #{tpu_custom_call.1} parent=1 // pred_fallthru
      _
    %1398 = vsyncpa [#allocation3], 1
    %1399 = vsyncpa [#allocation6], 1
    %1400 = vsyncpa [#allocation4], 1

</llo_original>
